<compile_context>
chip_gen: v7x
topology: tpu7x:2x2x1
jax: 0.10.0
libtpu: 0.0.40
codegen_flags: <defaults>
</compile_context>

<pallas_src>
import jax
import jax.numpy as jnp
from jax.experimental import pallas as pl
from jax.experimental.pallas import tpu as pltpu


def _round_up(v, m):
    return ((v + m - 1) // m) * m


def _fir_block_toeplitz_kernel(xc_ref, xt_ref, t0_ref, t1_ref, o_ref):
    """One grid step = (filter f, time tile j).

    xc_ref: (G, TJ, TT)  TJ current time blocks for the G rows sharing filter f
    xt_ref: (G, TJ, Kp)  the Kp samples immediately preceding each block
    t0_ref: (TT, TT)     in-block Toeplitz operator  T0[s, t] = h[t - s]
    t1_ref: (Kp, TT)     tail Toeplitz operator      T1[p, t] = h[t + Kp - p]
    o_ref : (G, TJ, TT)
    """
    G, TJ, TT = xc_ref.shape
    Kp = xt_ref.shape[-1]

    # Pack (channel, time-block) into the matmul M dimension.
    lhs0 = xc_ref[...].reshape(G * TJ, TT)
    lhs1 = xt_ref[...].reshape(G * TJ, Kp)

    acc = jnp.dot(lhs0, t0_ref[...],
                  preferred_element_type=jnp.float32,
                  precision=jax.lax.Precision.HIGHEST)
    acc = acc + jnp.dot(lhs1, t1_ref[...],
                        preferred_element_type=jnp.float32,
                        precision=jax.lax.Precision.HIGHEST)
    o_ref[...] = acc.reshape(G, TJ, TT).astype(o_ref.dtype)


def fir_filter_forward(input_signals, fir, eps=1e-12, tj_target=128):
    """FIRFilter.forward: input_signals (B, C_in, L), fir (B, C_f, K)."""
    B, C_in, L = input_signals.shape
    Bf, C_f, K = fir.shape
    if Bf != B:
        raise ValueError("batch mismatch between input_signals and fir")
    C_out = max(C_in, C_f)
    if C_in not in (1, C_out) or C_f not in (1, C_out) or C_out % C_f != 0:
        raise ValueError("unsupported channel configuration "
                         f"(C_in={C_in}, C_f={C_f})")
    G = C_out // C_f              # rows (channels) sharing one filter
    NF = B * C_f                  # number of distinct filters

    # ---- glue: tanh + normalize_impulse (tiny tensors, plain JAX) ----
    h = jnp.tanh(fir.astype(jnp.float32))
    energy = jnp.sum(h * h, axis=-1, keepdims=True)           # (B, C_f, 1)
    energy_mean = jnp.mean(energy, axis=-2, keepdims=True)    # (B, 1, 1)
    h = h / jnp.sqrt(energy_mean + eps)
    hf = h.reshape(NF, K)

    # ---- tiling parameters (lane dims multiples of 128, sublane-legal) ----
    TT = max(128, _round_up(max(K - 1, 1), 128))   # time block (>= K-1)
    Kp = _round_up(max(K - 1, 1), 128)             # halo width (<= TT)
    NJ = -(-L // TT)                               # number of time blocks
    tj_target = max(8, (int(tj_target) // 8) * 8)
    TJ = NJ if NJ <= tj_target else tj_target      # blocks packed per tile
    NJ_pad = _round_up(NJ, TJ)
    L_pad = NJ_pad * TT
    NJT = NJ_pad // TJ                             # time tiles (grid axis 1)

    # ---- banded Toeplitz operators per filter (small, wrapper side) ----
    Kbig = TT + Kp + 1
    hf_pad = jnp.pad(hf, ((0, 0), (0, Kbig - K)))  # taps >= K read zeros
    s_idx = jnp.arange(TT)
    t_idx = jnp.arange(TT)
    p_idx = jnp.arange(Kp)
    k0 = t_idx[None, :] - s_idx[:, None]           # tap index t - s
    k0 = jnp.where(k0 >= 0, k0, Kbig - 1)          # negative taps -> zero slot
    T0 = jnp.take(hf_pad, k0, axis=1)              # (NF, TT, TT)
    k1 = t_idx[None, :] + (Kp - p_idx)[:, None]    # tap index t + Kp - p (>= 1)
    T1 = jnp.take(hf_pad, k1, axis=1)              # (NF, Kp, TT)

    # ---- signal layout: (NF, G, NJ_pad, TT) + per-block left tails ----
    xb = jnp.broadcast_to(input_signals.astype(jnp.float32), (B, C_out, L))
    xr = xb.reshape(B, C_f, G, L).reshape(NF, G, L)
    xr = jnp.pad(xr, ((0, 0), (0, 0), (0, L_pad - L)))
    x_blocks = xr.reshape(NF, G, NJ_pad, TT)
    # x delayed by Kp samples: the first Kp entries of each block are exactly
    # that block's left halo (zeros before t=0), so no in-kernel halo handling.
    x_del = jnp.pad(xr, ((0, 0), (0, 0), (Kp, 0)))[:, :, :L_pad]
    x_tails = x_del.reshape(NF, G, NJ_pad, TT)[:, :, :, :Kp]

    grid = (NF, NJT)

    out = pl.pallas_call(
        _fir_block_toeplitz_kernel,
        out_shape=jax.ShapeDtypeStruct((NF, G, NJ_pad, TT), jnp.float32),
        grid=grid,
        in_specs=[
            pl.BlockSpec((None, G, TJ, TT), lambda f, j: (f, 0, j, 0)),
            pl.BlockSpec((None, G, TJ, Kp), lambda f, j: (f, 0, j, 0)),
            pl.BlockSpec((None, TT, TT), lambda f, j: (f, 0, 0)),
            pl.BlockSpec((None, Kp, TT), lambda f, j: (f, 0, 0)),
        ],
        out_specs=pl.BlockSpec((None, G, TJ, TT), lambda f, j: (f, 0, j, 0)),
        compiler_params=pltpu.CompilerParams(
            dimension_semantics=("parallel", "parallel"),
            vmem_limit_bytes=64 * 1024 * 1024),
    )(x_blocks, x_tails, T0, T1)

    y = out.reshape(NF, G, L_pad)[:, :, :L]
    return y.reshape(B, C_f, G, L).reshape(B, C_out, L)


def _reference_forward(input_signals, fir, eps=1e-12):
    """Pure-JAX reference (tanh + normalize_impulse + causal conv)."""
    B, C_in, L = input_signals.shape
    _, C_f, K = fir.shape
    C_out = max(C_in, C_f)
    h = jnp.tanh(fir)
    energy = jnp.sum(h * h, axis=-1, keepdims=True)
    h = h / jnp.sqrt(jnp.mean(energy, axis=-2, keepdims=True) + eps)
    xb = jnp.broadcast_to(input_signals, (B, C_out, L))
    hb = jnp.broadcast_to(h, (B, C_out, K))
    rows = []
    for b in range(B):
        for c in range(C_out):
            rows.append(jnp.convolve(xb[b, c], hb[b, c])[:L])
    return jnp.stack(rows).reshape(B, C_out, L)


if __name__ == "__main__":
    key = jax.random.PRNGKey(0)
    k1, k2, k3, k4 = jax.random.split(key, 4)

    # Test 1: processor_channel='mono' (single shared filter), stereo input.
    B, C_in, L, K = 2, 2, 256, 64
    x = jax.random.normal(k1, (B, C_in, L), dtype=jnp.float32)
    fir = 0.1 * jax.random.normal(k2, (B, 1, K), dtype=jnp.float32)
    out = jax.block_until_ready(fir_filter_forward(x, fir))
    ref = _reference_forward(x, fir)
    assert out.shape == (B, 2, L)
    err = float(jnp.max(jnp.abs(out - ref)))
    assert jnp.allclose(out, ref, atol=2e-3, rtol=2e-3), err

    # Test 2: per-channel filters ('stereo'), multi-tile time grid (exercises
    # the cross-tile halo path and TJ packing with TJ < number of blocks).
    B2, C2, L2, K2 = 2, 2, 2048, 100
    x2 = jax.random.normal(k3, (B2, C2, L2), dtype=jnp.float32)
    fir2 = 0.1 * jax.random.normal(k4, (B2, C2, K2), dtype=jnp.float32)
    out2 = jax.block_until_ready(fir_filter_forward(x2, fir2, tj_target=8))
    ref2 = _reference_forward(x2, fir2)
    assert out2.shape == (B2, 2, L2)
    err2 = float(jnp.max(jnp.abs(out2 - ref2)))
    assert jnp.allclose(out2, ref2, atol=2e-3, rtol=2e-3), err2

    print("KERNEL_OK")
</pallas_src>

<mosaic_0001>
module attributes {stable_mosaic.version = 11 : i64} {
  func.func @_fir_block_toeplitz_kernel(%arg0: i32, %arg1: i32, %arg2: memref<1x2x2x128xf32, #tpu.memory_space<vmem>>, %arg3: memref<1x2x2x128xf32, #tpu.memory_space<vmem>>, %arg4: memref<1x128x128xf32, #tpu.memory_space<vmem>>, %arg5: memref<1x128x128xf32, #tpu.memory_space<vmem>>, %arg6: memref<1x2x2x128xf32, #tpu.memory_space<vmem>>) attributes {dimension_semantics = [#tpu.dimension_semantics<parallel>, #tpu.dimension_semantics<parallel>], iteration_bounds = array<i64: 2, 1>, scalar_prefetch = 0 : i64, scratch_operands = 0 : i64, tpu.core_type = #tpu.core_type<tc>, window_params = [{transform_indices = @transform_0, window_bounds = array<i64: 1, 2, 2, 128>}, {transform_indices = @transform_1, window_bounds = array<i64: 1, 2, 2, 128>}, {transform_indices = @transform_2, window_bounds = array<i64: 1, 128, 128>}, {transform_indices = @transform_3, window_bounds = array<i64: 1, 128, 128>}, {transform_indices = @transform_4, window_bounds = array<i64: 1, 2, 2, 128>}]} {
    %c0 = arith.constant 0 : index
    %c0_0 = arith.constant 0 : index
    %c0_1 = arith.constant 0 : index
    %c0_2 = arith.constant 0 : index
    %0 = vector.load %arg2[%c0, %c0_0, %c0_1, %c0_2] : memref<1x2x2x128xf32, #tpu.memory_space<vmem>>, vector<1x2x2x128xf32>
    %1 = vector.shape_cast %0 : vector<1x2x2x128xf32> to vector<2x2x128xf32>
    %2 = vector.shape_cast %1 : vector<2x2x128xf32> to vector<4x128xf32>
    %c0_3 = arith.constant 0 : index
    %c0_4 = arith.constant 0 : index
    %c0_5 = arith.constant 0 : index
    %c0_6 = arith.constant 0 : index
    %3 = vector.load %arg3[%c0_3, %c0_4, %c0_5, %c0_6] : memref<1x2x2x128xf32, #tpu.memory_space<vmem>>, vector<1x2x2x128xf32>
    %4 = vector.shape_cast %3 : vector<1x2x2x128xf32> to vector<2x2x128xf32>
    %5 = vector.shape_cast %4 : vector<2x2x128xf32> to vector<4x128xf32>
    %c0_7 = arith.constant 0 : index
    %c0_8 = arith.constant 0 : index
    %c0_9 = arith.constant 0 : index
    %6 = vector.load %arg4[%c0_7, %c0_8, %c0_9] : memref<1x128x128xf32, #tpu.memory_space<vmem>>, vector<1x128x128xf32>
    %7 = vector.shape_cast %6 : vector<1x128x128xf32> to vector<128x128xf32>
    %cst = arith.constant dense<0.000000e+00> : vector<4x128xf32>
    %8 = tpu.matmul %2, %7, %cst {dimension_numbers = #tpu.dot_dimension_numbers<[1], [0], [0], [1], [0, 0, 1, 1], [], []>, precision = #tpu.contract_precision<fp32>} : vector<4x128xf32>, vector<128x128xf32>, vector<4x128xf32> -> vector<4x128xf32>
    %c0_10 = arith.constant 0 : index
    %c0_11 = arith.constant 0 : index
    %c0_12 = arith.constant 0 : index
    %9 = vector.load %arg5[%c0_10, %c0_11, %c0_12] : memref<1x128x128xf32, #tpu.memory_space<vmem>>, vector<1x128x128xf32>
    %10 = vector.shape_cast %9 : vector<1x128x128xf32> to vector<128x128xf32>
    %cst_13 = arith.constant dense<0.000000e+00> : vector<4x128xf32>
    %11 = tpu.matmul %5, %10, %cst_13 {dimension_numbers = #tpu.dot_dimension_numbers<[1], [0], [0], [1], [0, 0, 1, 1], [], []>, precision = #tpu.contract_precision<fp32>} : vector<4x128xf32>, vector<128x128xf32>, vector<4x128xf32> -> vector<4x128xf32>
    %12 = arith.addf %8, %11 : vector<4x128xf32>
    %13 = vector.shape_cast %12 : vector<4x128xf32> to vector<2x2x128xf32>
    %c0_14 = arith.constant 0 : index
    %c0_15 = arith.constant 0 : index
    %c0_16 = arith.constant 0 : index
    %c0_17 = arith.constant 0 : index
    %14 = vector.load %arg6[%c0_14, %c0_15, %c0_16, %c0_17] : memref<1x2x2x128xf32, #tpu.memory_space<vmem>>, vector<1x2x2x128xf32>
    %15 = vector.shape_cast %14 : vector<1x2x2x128xf32> to vector<2x2x128xf32>
    %16 = vector.shape_cast %13 : vector<2x2x128xf32> to vector<1x2x2x128xf32>
    tpu.vector_store %arg6[%c0_14, %c0_15, %c0_16, %c0_17], %16 {strides = array<i32>} : memref<1x2x2x128xf32, #tpu.memory_space<vmem>>, vector<1x2x2x128xf32>,
    return
  }
  func.func @transform_0(%arg0: i32, %arg1: i32) -> (i32, i32, i32, i32) {
    %c0_i32 = arith.constant 0 : i32
    %c0_i32_0 = arith.constant 0 : i32
    %c0_i32_1 = arith.constant 0 : i32
    return %arg0, %c0_i32, %arg1, %c0_i32_0 : i32, i32, i32, i32
  }
  func.func @transform_1(%arg0: i32, %arg1: i32) -> (i32, i32, i32, i32) {
    %c0_i32 = arith.constant 0 : i32
    %c0_i32_0 = arith.constant 0 : i32
    %c0_i32_1 = arith.constant 0 : i32
    return %arg0, %c0_i32, %arg1, %c0_i32_0 : i32, i32, i32, i32
  }
  func.func @transform_2(%arg0: i32, %arg1: i32) -> (i32, i32, i32) {
    %c0_i32 = arith.constant 0 : i32
    %c0_i32_0 = arith.constant 0 : i32
    %c0_i32_1 = arith.constant 0 : i32
    return %arg0, %c0_i32, %c0_i32_0 : i32, i32, i32
  }
  func.func @transform_3(%arg0: i32, %arg1: i32) -> (i32, i32, i32) {
    %c0_i32 = arith.constant 0 : i32
    %c0_i32_0 = arith.constant 0 : i32
    %c0_i32_1 = arith.constant 0 : i32
    return %arg0, %c0_i32, %c0_i32_0 : i32, i32, i32
  }
  func.func @transform_4(%arg0: i32, %arg1: i32) -> (i32, i32, i32, i32) {
    %c0_i32 = arith.constant 0 : i32
    %c0_i32_0 = arith.constant 0 : i32
    %c0_i32_1 = arith.constant 0 : i32
    return %arg0, %c0_i32, %arg1, %c0_i32_0 : i32, i32, i32, i32
  }
}

</mosaic_0001>

<llo_original>
// kernel: tpu_custom_call.1
$region0: #{tpu_custom_call.1}
  #allocation0 [shape = 'u32[]', space=smem, size = 0x4, offset = 0x4, fixed_abs, tag = 'smem constant byte address 0x4 - core index']
  #allocation1 [shape = 'u32[144,128]{1,0:T(1,128)}', space=vmem, size = 0x12000, scoped, tag = 'internal scratch']
  %s0 = inlined_call_operand.hbm [shape: f32[2,2,2,128], index: 0, kind: input, shape index: {}]
  %s1 = inlined_call_operand.hbm [shape: f32[2,2,2,128], index: 1, kind: input, shape index: {}]
  %s2 = inlined_call_operand.hbm [shape: f32[2,128,128], index: 2, kind: input, shape index: {}]
  %s3 = inlined_call_operand.hbm [shape: f32[2,128,128], index: 3, kind: input, shape index: {}]
  %s4 = inlined_call_operand.hbm [shape: f32[2,2,2,128], index: 4, kind: output, shape index: {}]
  %s5 = sld [smem:[#allocation0]]
  $region65: #{tpu_custom_call.1} parent=0
    _
  %s7 = ssub.s32 1, %s5
  %s8 = scalar_select 0, %s7, %s5
  $region1: #{tpu_custom_call.1} parent=0
    #allocation2 [shape = 'u8[4096]{0}', space=vmem, size = 0x1000, scoped, tag = 'input window, operand 0']
    #allocation3 [shape = 's32[2]{0}', space=sflag, size = 0x8, scoped, tag = 'scoped memory for tpu_custom_call.1']
    #allocation4 [shape = 's32[2]{0}', space=sflag, size = 0x8, scoped, tag = 'scoped memory for tpu_custom_call.1']
    #allocation5 [shape = 'u8[4096]{0}', space=vmem, size = 0x1000, scoped, tag = 'input window, operand 1']
    #allocation6 [shape = 's32[2]{0}', space=sflag, size = 0x8, scoped, tag = 'scoped memory for tpu_custom_call.1']
    #allocation7 [shape = 'u8[131072]{0}', space=vmem, size = 0x20000, scoped, tag = 'input window, operand 2']
    #allocation8 [shape = 'u8[131072]{0}', space=vmem, size = 0x20000, scoped, tag = 'input window, operand 3']
    #allocation9 [shape = 's32[2]{0}', space=sflag, size = 0x8, scoped, tag = 'scoped memory for tpu_custom_call.1']
    #allocation10 [shape = 'u8[4096]{0}', space=vmem, size = 0x1000, scoped, tag = 'output window, operand 0']
    %9 = vsyncpa [#allocation3], 0
    %s10 = scalar_lea.sflag [#allocation3], 1
    %11 = vsyncpa %s10, 0
    %12 = vsyncpa [#allocation6], 0
    %s13 = scalar_lea.sflag [#allocation6], 1
    %14 = vsyncpa %s13, 0
    %15 = vsyncpa [#allocation9], 0
    %s16 = scalar_lea.sflag [#allocation9], 1
    %17 = vsyncpa %s16, 0
    %18 = vsyncpa [#allocation4], 0
    %s19 = scalar_lea.sflag [#allocation4], 1
    %20 = vsyncpa %s19, 0
    loop: start=0, step=1, limit=4
    $region2: #{tpu_custom_call.1} parent=1 // loop_pre_header
      _
    $region3: #{tpu_custom_call.1} parent=1 // loop_header
      %s22 = sphi 0, %s26
      %p23 = scmp.ge.s32.totalorder %s22, 4
      %s29 = sphi 0, %s41
      %s30 = sphi 0, %s37
      %s31 = sphi 0, %s29
      %s32 = sphi 0, %s30
      %s33 = sphi 0, %s31
      %s34 = sphi 0, %s32
      %s46 = sphi 0, %s48
      %s49 = sphi 0, %s46
      %s50 = sphi 0, %s49
      %s66 = sphi 0, %s50
      %s74 = sphi 0, %s76
      %s77 = sphi 0, %s74
      %s78 = sphi 0, %s77
      %s94 = sphi 0, %s78
      %s100 = sphi 0, %s102
      %s103 = sphi 0, %s100
      %s104 = sphi 0, %s103
      %s120 = sphi 0, %s104
      %s126 = sphi 0, %s128
      %s129 = sphi 0, %s126
      %s130 = sphi 0, %s129
      %s146 = sphi 0, %s130
      %s154 = sphi 0, %s156
      %s157 = sphi 0, %s154
      %s158 = sphi 0, %s157
      %s174 = sphi 0, %s158
    $region4: #{tpu_custom_call.1} parent=1 // loop_header_branch
      %25 = sbr.rel (%p23) target = $region8
    $region5: #{tpu_custom_call.1} parent=1 // loop_body
      %s27 = ssub.s32 %s22, 1
      %s28 = ssub.s32 %s22, 2
      %s35 = sadd.s32 1, %s30
      %p36 = scmp.ge.s32.totalorder %s35, 1
      %s37 = scalar_select %p36, 0, %s35
      %s38 = sadd.s32 1, %s29
      %s39 = scalar_select %p36, %s38, %s29
      %p40 = scmp.ge.s32.totalorder %s39, 2
      %s41 = scalar_select %p40, 0, %s39
      %s42 = ssub.s32 %s29, %s41
      %s43 = ssub.s32 %s30, %s37
      %s44 = sor.u32 %s42, %s43
      %p45 = scmp.eq.s32.totalorder %s44, 0
      %s47 = sadd.s32 %s46, 1
      %s48 = scalar_select %p45, %s46, %s47
      %p51 = pneg %p45
      %p52 = scmp.eq.s32.totalorder %s22, 1
      %p53 = por %p51, %p52
      %p54 = scmp.ne.s32.totalorder %s46, %s49
      %p55 = scmp.eq.s32.totalorder %s22, 0
      %p56 = por %p54, %p55
      %p57 = scmp.ne.s32.totalorder %s46, %s49
      %p58 = scmp.eq.s32.totalorder %s27, 1
      %p59 = por %p57, %p58
      %p60 = scmp.ne.s32.totalorder %s49, %s50
      %p61 = scmp.eq.s32.totalorder %s27, 0
      %p62 = por %p60, %p61
      %p63 = scmp.ne.s32.totalorder %s49, %s50
      %p64 = scmp.eq.s32.totalorder %s28, 1
      %p65 = por %p63, %p64
      %p67 = scmp.ne.s32.totalorder %s50, %s66
      %p68 = scmp.eq.s32.totalorder %s28, 0
      %p69 = por %p67, %p68
      %s70 = ssub.s32 %s29, %s41
      %s71 = ssub.s32 %s30, %s37
      %s72 = sor.u32 %s70, %s71
      %p73 = scmp.eq.s32.totalorder %s72, 0
      %s75 = sadd.s32 %s74, 1
      %s76 = scalar_select %p73, %s74, %s75
      %p79 = pneg %p73
      %p80 = scmp.eq.s32.totalorder %s22, 1
      %p81 = por %p79, %p80
      %p82 = scmp.ne.s32.totalorder %s74, %s77
      %p83 = scmp.eq.s32.totalorder %s22, 0
      %p84 = por %p82, %p83
      %p85 = scmp.ne.s32.totalorder %s74, %s77
      %p86 = scmp.eq.s32.totalorder %s27, 1
      %p87 = por %p85, %p86
      %p88 = scmp.ne.s32.totalorder %s77, %s78
      %p89 = scmp.eq.s32.totalorder %s27, 0
      %p90 = por %p88, %p89
      %p91 = scmp.ne.s32.totalorder %s77, %s78
      %p92 = scmp.eq.s32.totalorder %s28, 1
      %p93 = por %p91, %p92
      %p95 = scmp.ne.s32.totalorder %s78, %s94
      %p96 = scmp.eq.s32.totalorder %s28, 0
      %p97 = por %p95, %p96
      %s98 = ssub.s32 %s29, %s41
      %p99 = scmp.eq.s32.totalorder %s98, 0
      %s101 = sadd.s32 %s100, 1
      %s102 = scalar_select %p99, %s100, %s101
      %p105 = pneg %p99
      %p106 = scmp.eq.s32.totalorder %s22, 1
      %p107 = por %p105, %p106
      %p108 = scmp.ne.s32.totalorder %s100, %s103
      %p109 = scmp.eq.s32.totalorder %s22, 0
      %p110 = por %p108, %p109
      %p111 = scmp.ne.s32.totalorder %s100, %s103
      %p112 = scmp.eq.s32.totalorder %s27, 1
      %p113 = por %p111, %p112
      %p114 = scmp.ne.s32.totalorder %s103, %s104
      %p115 = scmp.eq.s32.totalorder %s27, 0
      %p116 = por %p114, %p115
      %p117 = scmp.ne.s32.totalorder %s103, %s104
      %p118 = scmp.eq.s32.totalorder %s28, 1
      %p119 = por %p117, %p118
      %p121 = scmp.ne.s32.totalorder %s104, %s120
      %p122 = scmp.eq.s32.totalorder %s28, 0
      %p123 = por %p121, %p122
      %s124 = ssub.s32 %s29, %s41
      %p125 = scmp.eq.s32.totalorder %s124, 0
      %s127 = sadd.s32 %s126, 1
      %s128 = scalar_select %p125, %s126, %s127
      %p131 = pneg %p125
      %p132 = scmp.eq.s32.totalorder %s22, 1
      %p133 = por %p131, %p132
      %p134 = scmp.ne.s32.totalorder %s126, %s129
      %p135 = scmp.eq.s32.totalorder %s22, 0
      %p136 = por %p134, %p135
      %p137 = scmp.ne.s32.totalorder %s126, %s129
      %p138 = scmp.eq.s32.totalorder %s27, 1
      %p139 = por %p137, %p138
      %p140 = scmp.ne.s32.totalorder %s129, %s130
      %p141 = scmp.eq.s32.totalorder %s27, 0
      %p142 = por %p140, %p141
      %p143 = scmp.ne.s32.totalorder %s129, %s130
      %p144 = scmp.eq.s32.totalorder %s28, 1
      %p145 = por %p143, %p144
      %p147 = scmp.ne.s32.totalorder %s130, %s146
      %p148 = scmp.eq.s32.totalorder %s28, 0
      %p149 = por %p147, %p148
      %s150 = ssub.s32 %s29, %s41
      %s151 = ssub.s32 %s30, %s37
      %s152 = sor.u32 %s150, %s151
      %p153 = scmp.eq.s32.totalorder %s152, 0
      %s155 = sadd.s32 %s154, 1
      %s156 = scalar_select %p153, %s154, %s155
      %p159 = pneg %p153
      %p160 = scmp.eq.s32.totalorder %s22, 1
      %p161 = por %p159, %p160
      %p162 = scmp.ne.s32.totalorder %s154, %s157
      %p163 = scmp.eq.s32.totalorder %s22, 0
      %p164 = por %p162, %p163
      %p165 = scmp.ne.s32.totalorder %s154, %s157
      %p166 = scmp.eq.s32.totalorder %s27, 1
      %p167 = por %p165, %p166
      %p168 = scmp.ne.s32.totalorder %s157, %s158
      %p169 = scmp.eq.s32.totalorder %s27, 0
      %p170 = por %p168, %p169
      %p171 = scmp.ne.s32.totalorder %s157, %s158
      %p172 = scmp.eq.s32.totalorder %s28, 1
      %p173 = por %p171, %p172
      %p175 = scmp.ne.s32.totalorder %s158, %s174
      %p176 = scmp.eq.s32.totalorder %s28, 0
      %p177 = por %p175, %p176
      %p178 = scmp.le.s32.totalorder 1, %s22
      %p179 = scmp.lt.s32.totalorder %s22, 3
      %p180 = pnand %p178, %p179
      %p181 = pneg %p180
      // Predicated region
      $region9: #{tpu_custom_call.1} parent=5 // pred_check
        _
      $region10: #{tpu_custom_call.1} parent=5 // pred_check_branch
        %183 = sbr.rel (%p180) target = $region12
      $region11: #{tpu_custom_call.1} parent=5 // pred_region
        %s184 = ssub.s32 %s22, 1
      $region12: #{tpu_custom_call.1} parent=5 // pred_fallthru
        _
      %p185 = scmp.lt.s32.totalorder %s22, 2
      // Predicated region
      $region13: #{tpu_custom_call.1} parent=5 // pred_check
        %p186 = pneg %p185
      $region14: #{tpu_custom_call.1} parent=5 // pred_check_branch
        %188 = sbr.rel (%p186) target = $region16
      $region15: #{tpu_custom_call.1} parent=5 // pred_region
        // Predicated region
        $region17: #{tpu_custom_call.1} parent=15 // pred_check
          %p189 = pneg %p56
        $region18: #{tpu_custom_call.1} parent=15 // pred_check_branch
          %191 = sbr.rel (%p189) target = $region20
        $region19: #{tpu_custom_call.1} parent=15 // pred_region
          %s192 = sand.u32 %s46, 1
          %s193 = scalar_lea.sflag [#allocation3], %s192
          %s194 = sand.u32 %s46, 1
          %s195 = smul.addr %s194, 4
          %s196 = scalar_lea.vmem [#allocation2], %s195
          %s198 = ssub.s32 64, 64
          %199 = vsyncadd %s193, %s198
          %s200 = smul.addr %s29, 2
          %s201 = sadd.s32 %s30, %s200
          %s202 = smul.addr %s201, 32
          %s203 = scalar_lea.hbm %s0, %s202
          %s204 = sshll.u32 %s196, 4
          %s205 = int_to_ptr.vmem [resolvable:$true] %s204
          %210 = dma.hbm_to_vmem [thread:$0]  %s203, 64, %s205, %s193, 32, 32, 2
        $region20: #{tpu_custom_call.1} parent=15 // pred_fallthru
          _
        // Predicated region
        $region21: #{tpu_custom_call.1} parent=15 // pred_check
          %p211 = pneg %p84
        $region22: #{tpu_custom_call.1} parent=15 // pred_check_branch
          %213 = sbr.rel (%p211) target = $region24
        $region23: #{tpu_custom_call.1} parent=15 // pred_region
          %s214 = sand.u32 %s22, 1
          %s215 = scalar_lea.sflag [#allocation6], %s214
          %s216 = sand.u32 %s74, 1
          %s217 = smul.addr %s216, 4
          %s218 = scalar_lea.vmem [#allocation5], %s217
          %s220 = ssub.s32 64, 64
          %221 = vsyncadd %s215, %s220
          %s222 = smul.addr %s29, 2
          %s223 = sadd.s32 %s30, %s222
          %s224 = smul.addr %s223, 32
          %s225 = scalar_lea.hbm %s1, %s224
          %s226 = sshll.u32 %s218, 4
          %s227 = int_to_ptr.vmem [resolvable:$true] %s226
          %232 = dma.hbm_to_vmem [thread:$0]  %s225, 64, %s227, %s215, 32, 32, 2
        $region24: #{tpu_custom_call.1} parent=15 // pred_fallthru
          _
        // Predicated region
        $region25: #{tpu_custom_call.1} parent=15 // pred_check
          %p233 = pneg %p110
        $region26: #{tpu_custom_call.1} parent=15 // pred_check_branch
          %235 = sbr.rel (%p233) target = $region28
        $region27: #{tpu_custom_call.1} parent=15 // pred_region
          %s236 = sand.u32 %s22, 1
          %s237 = scalar_lea.sflag [#allocation6], %s236
          %s238 = sand.u32 %s100, 1
          %s239 = smul.addr %s238, 128
          %s240 = scalar_lea.vmem [#allocation7], %s239
          %s242 = ssub.s32 2048, 2048
          %243 = vsyncadd %s237, %s242
          %s244 = smul.addr %s29, 16
          %s245 = smul.addr %s244, 128
          %s246 = scalar_lea.hbm %s2, %s245
          %s247 = sshll.u32 %s240, 4
          %s248 = int_to_ptr.vmem [resolvable:$true] %s247
          %253 = dma.hbm_to_vmem [thread:$0]  %s246, 2048, %s248, %s237, 128, 128, 8
        $region28: #{tpu_custom_call.1} parent=15 // pred_fallthru
          _
        // Predicated region
        $region29: #{tpu_custom_call.1} parent=15 // pred_check
          %p254 = pneg %p136
        $region30: #{tpu_custom_call.1} parent=15 // pred_check_branch
          %256 = sbr.rel (%p254) target = $region32
        $region31: #{tpu_custom_call.1} parent=15 // pred_region
          %s257 = sand.u32 %s126, 1
          %s258 = scalar_lea.sflag [#allocation9], %s257
          %s259 = sand.u32 %s126, 1
          %s260 = smul.addr %s259, 128
          %s261 = scalar_lea.vmem [#allocation8], %s260
          %s263 = ssub.s32 2048, 2048
          %264 = vsyncadd %s258, %s263
          %s265 = smul.addr %s29, 16
          %s266 = smul.addr %s265, 128
          %s267 = scalar_lea.hbm %s3, %s266
          %s268 = sshll.u32 %s261, 4
          %s269 = int_to_ptr.vmem [resolvable:$true] %s268
          %274 = dma.hbm_to_vmem [thread:$0]  %s267, 2048, %s269, %s258, 128, 128, 8
        $region32: #{tpu_custom_call.1} parent=15 // pred_fallthru
          _
      $region16: #{tpu_custom_call.1} parent=5 // pred_fallthru
        _
      %p275 = scmp.le.s32.totalorder 1, %s22
      %p276 = scmp.lt.s32.totalorder %s22, 3
      %p277 = pnand %p275, %p276
      %p278 = pneg %p277
      // Predicated region
      $region33: #{tpu_custom_call.1} parent=5 // pred_check
        _
      $region34: #{tpu_custom_call.1} parent=5 // pred_check_branch
        %280 = sbr.rel (%p277) target = $region36
      $region35: #{tpu_custom_call.1} parent=5 // pred_region
        %s281 = ssub.s32 %s22, 1
        %s282 = sand.u32 %s49, 1
        %s283 = scalar_lea.sflag [#allocation3], %s282
        %s284 = sand.u32 %s49, 1
        %s285 = smul.addr %s284, 4
        %s286 = scalar_lea.vmem [#allocation2], %s285
        // Predicated region
        $region37: #{tpu_custom_call.1} parent=35 // pred_check
          %p287 = pneg %p62
        $region38: #{tpu_custom_call.1} parent=35 // pred_check_branch
          %289 = sbr.rel (%p287) target = $region40
        $region39: #{tpu_custom_call.1} parent=35 // pred_region
          %290 = dma.done %s283, 64
        $region40: #{tpu_custom_call.1} parent=35 // pred_fallthru
          _
        %s291 = sand.u32 %s27, 1
        %s292 = scalar_lea.sflag [#allocation6], %s291
        %s293 = sand.u32 %s77, 1
        %s294 = smul.addr %s293, 4
        %s295 = scalar_lea.vmem [#allocation5], %s294
        // Predicated region
        $region41: #{tpu_custom_call.1} parent=35 // pred_check
          %p296 = pneg %p90
        $region42: #{tpu_custom_call.1} parent=35 // pred_check_branch
          %298 = sbr.rel (%p296) target = $region44
        $region43: #{tpu_custom_call.1} parent=35 // pred_region
          %299 = dma.done %s292, 64
        $region44: #{tpu_custom_call.1} parent=35 // pred_fallthru
          _
        %s300 = sand.u32 %s27, 1
        %s301 = scalar_lea.sflag [#allocation6], %s300
        %s302 = sand.u32 %s103, 1
        %s303 = smul.addr %s302, 128
        %s304 = scalar_lea.vmem [#allocation7], %s303
        // Predicated region
        $region45: #{tpu_custom_call.1} parent=35 // pred_check
          %p305 = pneg %p116
        $region46: #{tpu_custom_call.1} parent=35 // pred_check_branch
          %307 = sbr.rel (%p305) target = $region48
        $region47: #{tpu_custom_call.1} parent=35 // pred_region
          %308 = dma.done %s301, 2048
        $region48: #{tpu_custom_call.1} parent=35 // pred_fallthru
          _
        %s309 = sand.u32 %s129, 1
        %s310 = scalar_lea.sflag [#allocation9], %s309
        %s311 = sand.u32 %s129, 1
        %s312 = smul.addr %s311, 128
        %s313 = scalar_lea.vmem [#allocation8], %s312
        // Predicated region
        $region49: #{tpu_custom_call.1} parent=35 // pred_check
          %p314 = pneg %p142
        $region50: #{tpu_custom_call.1} parent=35 // pred_check_branch
          %316 = sbr.rel (%p314) target = $region52
        $region51: #{tpu_custom_call.1} parent=35 // pred_region
          %317 = dma.done %s310, 2048
        $region52: #{tpu_custom_call.1} parent=35 // pred_fallthru
          _
        %s318 = sand.u32 %s49, 1
        %s319 = scalar_lea.sflag [#allocation3], %s318
        %s320 = sand.u32 %s49, 1
        %s321 = smul.addr %s320, 4
        %s322 = scalar_lea.vmem [#allocation2], %s321
        %p323 = pneg %p62
        %p324 = pneg %p59
        %s325 = sand.u32 %s27, 1
        %s326 = scalar_lea.sflag [#allocation6], %s325
        %s327 = sand.u32 %s77, 1
        %s328 = smul.addr %s327, 4
        %s329 = scalar_lea.vmem [#allocation5], %s328
        %p330 = pneg %p90
        %p331 = pneg %p87
        %s332 = sand.u32 %s27, 1
        %s333 = scalar_lea.sflag [#allocation6], %s332
        %s334 = sand.u32 %s103, 1
        %s335 = smul.addr %s334, 128
        %s336 = scalar_lea.vmem [#allocation7], %s335
        %p337 = pneg %p116
        %p338 = pneg %p113
        %s339 = sand.u32 %s129, 1
        %s340 = scalar_lea.sflag [#allocation9], %s339
        %s341 = sand.u32 %s129, 1
        %s342 = smul.addr %s341, 128
        %s343 = scalar_lea.vmem [#allocation8], %s342
        %p344 = pneg %p142
        %p345 = pneg %p139
        %p346 = pneg %p170
        %p347 = pneg %p167
        %s348 = sand.u32 %s157, 1
        %s349 = scalar_lea.sflag [#allocation4], %s348
        %s350 = sand.u32 %s157, 1
        %s351 = smul.addr %s350, 4
        %s352 = scalar_lea.vmem [#allocation10], %s351
        %v353 = vld [vmem:[%s286] sm:$0x3]
        %v354 = vld [vmem:[%s286 + $0x2] sm:$0x3]
        %v355 = vld [vmem:[%s295] sm:$0x3]
        %v356 = vld [vmem:[%s295 + $0x2] sm:$0x3]
        %v357 = vld [vmem:[%s304] sm:$0xff]
        %v358 = vld [vmem:[%s304 + $0x8] sm:$0xff]
        %v359 = vld [vmem:[%s304 + $0x10] sm:$0xff]
        %v360 = vld [vmem:[%s304 + $0x18] sm:$0xff]
        %v361 = vld [vmem:[%s304 + $0x20] sm:$0xff]
        %v362 = vld [vmem:[%s304 + $0x28] sm:$0xff]
        %v363 = vld [vmem:[%s304 + $0x30] sm:$0xff]
        %v364 = vld [vmem:[%s304 + $0x38] sm:$0xff]
        %v365 = vld [vmem:[%s304 + $0x40] sm:$0xff]
        %v366 = vld [vmem:[%s304 + $0x48] sm:$0xff]
        %v367 = vld [vmem:[%s304 + $0x50] sm:$0xff]
        %v368 = vld [vmem:[%s304 + $0x58] sm:$0xff]
        %v369 = vld [vmem:[%s304 + $0x60] sm:$0xff]
        %v370 = vld [vmem:[%s304 + $0x68] sm:$0xff]
        %v371 = vld [vmem:[%s304 + $0x70] sm:$0xff]
        %v372 = vld [vmem:[%s304 + $0x78] sm:$0xff]
        %v373 = vld [vmem:[%s313] sm:$0xff]
        %v374 = vld [vmem:[%s313 + $0x8] sm:$0xff]
        %v375 = vld [vmem:[%s313 + $0x10] sm:$0xff]
        %v376 = vld [vmem:[%s313 + $0x18] sm:$0xff]
        %v377 = vld [vmem:[%s313 + $0x20] sm:$0xff]
        %v378 = vld [vmem:[%s313 + $0x28] sm:$0xff]
        %v379 = vld [vmem:[%s313 + $0x30] sm:$0xff]
        %v380 = vld [vmem:[%s313 + $0x38] sm:$0xff]
        %v381 = vld [vmem:[%s313 + $0x40] sm:$0xff]
        %v382 = vld [vmem:[%s313 + $0x48] sm:$0xff]
        %v383 = vld [vmem:[%s313 + $0x50] sm:$0xff]
        %v384 = vld [vmem:[%s313 + $0x58] sm:$0xff]
        %v385 = vld [vmem:[%s313 + $0x60] sm:$0xff]
        %v386 = vld [vmem:[%s313 + $0x68] sm:$0xff]
        %v387 = vld [vmem:[%s313 + $0x70] sm:$0xff]
        %v388 = vld [vmem:[%s313 + $0x78] sm:$0xff]
        %v391 = vcombine.low %v355, %v356
        %v393 = vunpack.c.l.s4 1983009808
        %v394 = vunpack.c.0.s8 %v393
        %v395 = vlaneseq
        %v396 = vshrl.u32 %v395, 7
        %v397 = vsub.s32 %v394, %v396
        %v398 = vrot.slane %v391, %v397
        %400 = vmatprep.subr.mxu0 0.0
        %v401 = vand.u32 %v373, 4294901760
        %402 = vmatpush1.msra.mxu0 %v401
        %403 = vmatprep.subr.mxu0 0.0
        %v404 = vand.u32 %v374, 4294901760
        %405 = vmatpush1.msra.mxu0 %v404
        %406 = vmatprep.subr.mxu0 0.0
        %v407 = vand.u32 %v375, 4294901760
        %408 = vmatpush1.msra.mxu0 %v407
        %409 = vmatprep.subr.mxu0 0.0
        %v410 = vand.u32 %v376, 4294901760
        %411 = vmatpush1.msra.mxu0 %v410
        %412 = vmatprep.subr.mxu0 0.0
        %v413 = vand.u32 %v377, 4294901760
        %414 = vmatpush1.msra.mxu0 %v413
        %415 = vmatprep.subr.mxu0 0.0
        %v416 = vand.u32 %v378, 4294901760
        %417 = vmatpush1.msra.mxu0 %v416
        %418 = vmatprep.subr.mxu0 0.0
        %v419 = vand.u32 %v379, 4294901760
        %420 = vmatpush1.msra.mxu0 %v419
        %421 = vmatprep.subr.mxu0 0.0
        %v422 = vand.u32 %v380, 4294901760
        %423 = vmatpush1.msra.mxu0 %v422
        %424 = vmatprep.subr.mxu0 0.0
        %v425 = vand.u32 %v381, 4294901760
        %426 = vmatpush1.msra.mxu0 %v425
        %427 = vmatprep.subr.mxu0 0.0
        %v428 = vand.u32 %v382, 4294901760
        %429 = vmatpush1.msra.mxu0 %v428
        %430 = vmatprep.subr.mxu0 0.0
        %v431 = vand.u32 %v383, 4294901760
        %432 = vmatpush1.msra.mxu0 %v431
        %433 = vmatprep.subr.mxu0 0.0
        %v434 = vand.u32 %v384, 4294901760
        %435 = vmatpush1.msra.mxu0 %v434
        %436 = vmatprep.subr.mxu0 0.0
        %v437 = vand.u32 %v385, 4294901760
        %438 = vmatpush1.msra.mxu0 %v437
        %439 = vmatprep.subr.mxu0 0.0
        %v440 = vand.u32 %v386, 4294901760
        %441 = vmatpush1.msra.mxu0 %v440
        %442 = vmatprep.subr.mxu0 0.0
        %v443 = vand.u32 %v387, 4294901760
        %444 = vmatpush1.msra.mxu0 %v443
        %445 = vmatprep.subr.mxu0 0.0
        %v446 = vand.u32 %v388, 4294901760
        %447 = vmatpush1.msra.mxu0 %v446
        %448 = vmatprep.subr.mxu0 0.0
        %449 = vmatpush1.msra.mxu0 0.0
        %450 = vmatprep.subr.mxu0 0.0
        %451 = vmatpush1.msra.mxu0 0.0
        %452 = vmatprep.subr.mxu0 0.0
        %453 = vmatpush1.msra.mxu0 0.0
        %454 = vmatprep.subr.mxu0 0.0
        %455 = vmatpush1.msra.mxu0 0.0
        %456 = vmatprep.subr.mxu0 0.0
        %457 = vmatpush1.msra.mxu0 0.0
        %458 = vmatprep.subr.mxu0 0.0
        %459 = vmatpush1.msra.mxu0 0.0
        %460 = vmatprep.subr.mxu0 0.0
        %461 = vmatpush1.msra.mxu0 0.0
        %462 = vmatprep.subr.mxu0 0.0
        %463 = vmatpush1.msra.mxu0 0.0
        %464 = vmatprep.subr.mxu0 0.0
        %465 = vmatpush1.msra.mxu0 0.0
        %466 = vmatprep.subr.mxu0 0.0
        %467 = vmatpush1.msra.mxu0 0.0
        %468 = vmatprep.subr.mxu0 0.0
        %469 = vmatpush1.msra.mxu0 0.0
        %470 = vmatprep.subr.mxu0 0.0
        %471 = vmatpush1.msra.mxu0 0.0
        %472 = vmatprep.subr.mxu0 0.0
        %473 = vmatpush1.msra.mxu0 0.0
        %474 = vmatprep.subr.mxu0 0.0
        %475 = vmatpush1.msra.mxu0 0.0
        %476 = vmatprep.subr.mxu0 0.0
        %477 = vmatpush1.msra.mxu0 0.0
        %478 = vmatprep.subr.mxu0 0.0
        %479 = vmatpush1.msra.mxu0 0.0
        %480 = vmatprep.mubr.f32.mxu0 0.0
        %v481 = vand.u32 %v398, 4294901760
        %v482 = vsub.f32 %v398, %v481
        %v483 = vand.u32 %v482, 4294901760
        %v484 = vsub.f32 %v482, %v483
        %v485 = vand.u32 %v484, 4294901760
        %486 = vmatmul.mubr.f32.gmra.mrb[0].mxu0 %v485
        %v487 = vpop.f32.mrb[0].mxu0
        %v488 = vadd.f32 0.0, %v487
        %v489 = vpop.f32.mrb[0].mxu0
        %490 = vdwg.mxu0
        %491 = vmatprep.subr.mxu0 0.0
        %v492 = vand.u32 %v373, 4294901760
        %v493 = vsub.f32 %v373, %v492
        %v494 = vand.u32 %v493, 4294901760
        %v495 = vsub.f32 %v493, %v494
        %v496 = vand.u32 %v495, 4294901760
        %497 = vmatpush1.msra.mxu0 %v496
        %498 = vmatprep.subr.mxu0 0.0
        %v499 = vand.u32 %v374, 4294901760
        %v500 = vsub.f32 %v374, %v499
        %v501 = vand.u32 %v500, 4294901760
        %v502 = vsub.f32 %v500, %v501
        %v503 = vand.u32 %v502, 4294901760
        %504 = vmatpush1.msra.mxu0 %v503
        %505 = vmatprep.subr.mxu0 0.0
        %v506 = vand.u32 %v375, 4294901760
        %v507 = vsub.f32 %v375, %v506
        %v508 = vand.u32 %v507, 4294901760
        %v509 = vsub.f32 %v507, %v508
        %v510 = vand.u32 %v509, 4294901760
        %511 = vmatpush1.msra.mxu0 %v510
        %512 = vmatprep.subr.mxu0 0.0
        %v513 = vand.u32 %v376, 4294901760
        %v514 = vsub.f32 %v376, %v513
        %v515 = vand.u32 %v514, 4294901760
        %v516 = vsub.f32 %v514, %v515
        %v517 = vand.u32 %v516, 4294901760
        %518 = vmatpush1.msra.mxu0 %v517
        %519 = vmatprep.subr.mxu0 0.0
        %v520 = vand.u32 %v377, 4294901760
        %v521 = vsub.f32 %v377, %v520
        %v522 = vand.u32 %v521, 4294901760
        %v523 = vsub.f32 %v521, %v522
        %v524 = vand.u32 %v523, 4294901760
        %525 = vmatpush1.msra.mxu0 %v524
        %526 = vmatprep.subr.mxu0 0.0
        %v527 = vand.u32 %v378, 4294901760
        %v528 = vsub.f32 %v378, %v527
        %v529 = vand.u32 %v528, 4294901760
        %v530 = vsub.f32 %v528, %v529
        %v531 = vand.u32 %v530, 4294901760
        %532 = vmatpush1.msra.mxu0 %v531
        %533 = vmatprep.subr.mxu0 0.0
        %v534 = vand.u32 %v379, 4294901760
        %v535 = vsub.f32 %v379, %v534
        %v536 = vand.u32 %v535, 4294901760
        %v537 = vsub.f32 %v535, %v536
        %v538 = vand.u32 %v537, 4294901760
        %539 = vmatpush1.msra.mxu0 %v538
        %540 = vmatprep.subr.mxu0 0.0
        %v541 = vand.u32 %v380, 4294901760
        %v542 = vsub.f32 %v380, %v541
        %v543 = vand.u32 %v542, 4294901760
        %v544 = vsub.f32 %v542, %v543
        %v545 = vand.u32 %v544, 4294901760
        %546 = vmatpush1.msra.mxu0 %v545
        %547 = vmatprep.subr.mxu0 0.0
        %v548 = vand.u32 %v381, 4294901760
        %v549 = vsub.f32 %v381, %v548
        %v550 = vand.u32 %v549, 4294901760
        %v551 = vsub.f32 %v549, %v550
        %v552 = vand.u32 %v551, 4294901760
        %553 = vmatpush1.msra.mxu0 %v552
        %554 = vmatprep.subr.mxu0 0.0
        %v555 = vand.u32 %v382, 4294901760
        %v556 = vsub.f32 %v382, %v555
        %v557 = vand.u32 %v556, 4294901760
        %v558 = vsub.f32 %v556, %v557
        %v559 = vand.u32 %v558, 4294901760
        %560 = vmatpush1.msra.mxu0 %v559
        %561 = vmatprep.subr.mxu0 0.0
        %v562 = vand.u32 %v383, 4294901760
        %v563 = vsub.f32 %v383, %v562
        %v564 = vand.u32 %v563, 4294901760
        %v565 = vsub.f32 %v563, %v564
        %v566 = vand.u32 %v565, 4294901760
        %567 = vmatpush1.msra.mxu0 %v566
        %568 = vmatprep.subr.mxu0 0.0
        %v569 = vand.u32 %v384, 4294901760
        %v570 = vsub.f32 %v384, %v569
        %v571 = vand.u32 %v570, 4294901760
        %v572 = vsub.f32 %v570, %v571
        %v573 = vand.u32 %v572, 4294901760
        %574 = vmatpush1.msra.mxu0 %v573
        %575 = vmatprep.subr.mxu0 0.0
        %v576 = vand.u32 %v385, 4294901760
        %v577 = vsub.f32 %v385, %v576
        %v578 = vand.u32 %v577, 4294901760
        %v579 = vsub.f32 %v577, %v578
        %v580 = vand.u32 %v579, 4294901760
        %581 = vmatpush1.msra.mxu0 %v580
        %582 = vmatprep.subr.mxu0 0.0
        %v583 = vand.u32 %v386, 4294901760
        %v584 = vsub.f32 %v386, %v583
        %v585 = vand.u32 %v584, 4294901760
        %v586 = vsub.f32 %v584, %v585
        %v587 = vand.u32 %v586, 4294901760
        %588 = vmatpush1.msra.mxu0 %v587
        %589 = vmatprep.subr.mxu0 0.0
        %v590 = vand.u32 %v387, 4294901760
        %v591 = vsub.f32 %v387, %v590
        %v592 = vand.u32 %v591, 4294901760
        %v593 = vsub.f32 %v591, %v592
        %v594 = vand.u32 %v593, 4294901760
        %595 = vmatpush1.msra.mxu0 %v594
        %596 = vmatprep.subr.mxu0 0.0
        %v597 = vand.u32 %v388, 4294901760
        %v598 = vsub.f32 %v388, %v597
        %v599 = vand.u32 %v598, 4294901760
        %v600 = vsub.f32 %v598, %v599
        %v601 = vand.u32 %v600, 4294901760
        %602 = vmatpush1.msra.mxu0 %v601
        %603 = vmatprep.subr.mxu0 0.0
        %604 = vmatpush1.msra.mxu0 0.0
        %605 = vmatprep.subr.mxu0 0.0
        %606 = vmatpush1.msra.mxu0 0.0
        %607 = vmatprep.subr.mxu0 0.0
        %608 = vmatpush1.msra.mxu0 0.0
        %609 = vmatprep.subr.mxu0 0.0
        %610 = vmatpush1.msra.mxu0 0.0
        %611 = vmatprep.subr.mxu0 0.0
        %612 = vmatpush1.msra.mxu0 0.0
        %613 = vmatprep.subr.mxu0 0.0
        %614 = vmatpush1.msra.mxu0 0.0
        %615 = vmatprep.subr.mxu0 0.0
        %616 = vmatpush1.msra.mxu0 0.0
        %617 = vmatprep.subr.mxu0 0.0
        %618 = vmatpush1.msra.mxu0 0.0
        %619 = vmatprep.subr.mxu0 0.0
        %620 = vmatpush1.msra.mxu0 0.0
        %621 = vmatprep.subr.mxu0 0.0
        %622 = vmatpush1.msra.mxu0 0.0
        %623 = vmatprep.subr.mxu0 0.0
        %624 = vmatpush1.msra.mxu0 0.0
        %625 = vmatprep.subr.mxu0 0.0
        %626 = vmatpush1.msra.mxu0 0.0
        %627 = vmatprep.subr.mxu0 0.0
        %628 = vmatpush1.msra.mxu0 0.0
        %629 = vmatprep.subr.mxu0 0.0
        %630 = vmatpush1.msra.mxu0 0.0
        %631 = vmatprep.subr.mxu0 0.0
        %632 = vmatpush1.msra.mxu0 0.0
        %633 = vmatprep.subr.mxu0 0.0
        %634 = vmatpush1.msra.mxu0 0.0
        %635 = vmatprep.mubr.f32.mxu0 0.0
        %v636 = vand.u32 %v398, 4294901760
        %637 = vmatmul.mubr.f32.gmra.mrb[0].mxu0 %v636
        %v638 = vpop.f32.mrb[0].mxu0
        %v639 = vadd.f32 %v488, %v638
        %v640 = vpop.f32.mrb[0].mxu0
        %641 = vdwg.mxu0
        %642 = vmatprep.subr.mxu0 0.0
        %v643 = vand.u32 %v373, 4294901760
        %v644 = vsub.f32 %v373, %v643
        %645 = vmatpush1.msra.mxu0 %v644
        %646 = vmatprep.subr.mxu0 0.0
        %v647 = vand.u32 %v374, 4294901760
        %v648 = vsub.f32 %v374, %v647
        %649 = vmatpush1.msra.mxu0 %v648
        %650 = vmatprep.subr.mxu0 0.0
        %v651 = vand.u32 %v375, 4294901760
        %v652 = vsub.f32 %v375, %v651
        %653 = vmatpush1.msra.mxu0 %v652
        %654 = vmatprep.subr.mxu0 0.0
        %v655 = vand.u32 %v376, 4294901760
        %v656 = vsub.f32 %v376, %v655
        %657 = vmatpush1.msra.mxu0 %v656
        %658 = vmatprep.subr.mxu0 0.0
        %v659 = vand.u32 %v377, 4294901760
        %v660 = vsub.f32 %v377, %v659
        %661 = vmatpush1.msra.mxu0 %v660
        %662 = vmatprep.subr.mxu0 0.0
        %v663 = vand.u32 %v378, 4294901760
        %v664 = vsub.f32 %v378, %v663
        %665 = vmatpush1.msra.mxu0 %v664
        %666 = vmatprep.subr.mxu0 0.0
        %v667 = vand.u32 %v379, 4294901760
        %v668 = vsub.f32 %v379, %v667
        %669 = vmatpush1.msra.mxu0 %v668
        %670 = vmatprep.subr.mxu0 0.0
        %v671 = vand.u32 %v380, 4294901760
        %v672 = vsub.f32 %v380, %v671
        %673 = vmatpush1.msra.mxu0 %v672
        %674 = vmatprep.subr.mxu0 0.0
        %v675 = vand.u32 %v381, 4294901760
        %v676 = vsub.f32 %v381, %v675
        %677 = vmatpush1.msra.mxu0 %v676
        %678 = vmatprep.subr.mxu0 0.0
        %v679 = vand.u32 %v382, 4294901760
        %v680 = vsub.f32 %v382, %v679
        %681 = vmatpush1.msra.mxu0 %v680
        %682 = vmatprep.subr.mxu0 0.0
        %v683 = vand.u32 %v383, 4294901760
        %v684 = vsub.f32 %v383, %v683
        %685 = vmatpush1.msra.mxu0 %v684
        %686 = vmatprep.subr.mxu0 0.0
        %v687 = vand.u32 %v384, 4294901760
        %v688 = vsub.f32 %v384, %v687
        %689 = vmatpush1.msra.mxu0 %v688
        %690 = vmatprep.subr.mxu0 0.0
        %v691 = vand.u32 %v385, 4294901760
        %v692 = vsub.f32 %v385, %v691
        %693 = vmatpush1.msra.mxu0 %v692
        %694 = vmatprep.subr.mxu0 0.0
        %v695 = vand.u32 %v386, 4294901760
        %v696 = vsub.f32 %v386, %v695
        %697 = vmatpush1.msra.mxu0 %v696
        %698 = vmatprep.subr.mxu0 0.0
        %v699 = vand.u32 %v387, 4294901760
        %v700 = vsub.f32 %v387, %v699
        %701 = vmatpush1.msra.mxu0 %v700
        %702 = vmatprep.subr.mxu0 0.0
        %v703 = vand.u32 %v388, 4294901760
        %v704 = vsub.f32 %v388, %v703
        %705 = vmatpush1.msra.mxu0 %v704
        %706 = vmatprep.subr.mxu0 0.0
        %707 = vmatpush1.msra.mxu0 0.0
        %708 = vmatprep.subr.mxu0 0.0
        %709 = vmatpush1.msra.mxu0 0.0
        %710 = vmatprep.subr.mxu0 0.0
        %711 = vmatpush1.msra.mxu0 0.0
        %712 = vmatprep.subr.mxu0 0.0
        %713 = vmatpush1.msra.mxu0 0.0
        %714 = vmatprep.subr.mxu0 0.0
        %715 = vmatpush1.msra.mxu0 0.0
        %716 = vmatprep.subr.mxu0 0.0
        %717 = vmatpush1.msra.mxu0 0.0
        %718 = vmatprep.subr.mxu0 0.0
        %719 = vmatpush1.msra.mxu0 0.0
        %720 = vmatprep.subr.mxu0 0.0
        %721 = vmatpush1.msra.mxu0 0.0
        %722 = vmatprep.subr.mxu0 0.0
        %723 = vmatpush1.msra.mxu0 0.0
        %724 = vmatprep.subr.mxu0 0.0
        %725 = vmatpush1.msra.mxu0 0.0
        %726 = vmatprep.subr.mxu0 0.0
        %727 = vmatpush1.msra.mxu0 0.0
        %728 = vmatprep.subr.mxu0 0.0
        %729 = vmatpush1.msra.mxu0 0.0
        %730 = vmatprep.subr.mxu0 0.0
        %731 = vmatpush1.msra.mxu0 0.0
        %732 = vmatprep.subr.mxu0 0.0
        %733 = vmatpush1.msra.mxu0 0.0
        %734 = vmatprep.subr.mxu0 0.0
        %735 = vmatpush1.msra.mxu0 0.0
        %736 = vmatprep.subr.mxu0 0.0
        %737 = vmatpush1.msra.mxu0 0.0
        %738 = vmatprep.mubr.f32.mxu0 0.0
        %v739 = vand.u32 %v398, 4294901760
        %v740 = vsub.f32 %v398, %v739
        %741 = vmatmul.mubr.f32.gmra.mrb[0].mxu0 %v740
        %v742 = vpop.f32.mrb[0].mxu0
        %v743 = vadd.f32 %v639, %v742
        %v744 = vpop.f32.mrb[0].mxu0
        %745 = vdwg.mxu0
        %746 = vmatprep.subr.mxu0 0.0
        %v747 = vand.u32 %v373, 4294901760
        %748 = vmatpush1.msra.mxu0 %v747
        %749 = vmatprep.subr.mxu0 0.0
        %v750 = vand.u32 %v374, 4294901760
        %751 = vmatpush1.msra.mxu0 %v750
        %752 = vmatprep.subr.mxu0 0.0
        %v753 = vand.u32 %v375, 4294901760
        %754 = vmatpush1.msra.mxu0 %v753
        %755 = vmatprep.subr.mxu0 0.0
        %v756 = vand.u32 %v376, 4294901760
        %757 = vmatpush1.msra.mxu0 %v756
        %758 = vmatprep.subr.mxu0 0.0
        %v759 = vand.u32 %v377, 4294901760
        %760 = vmatpush1.msra.mxu0 %v759
        %761 = vmatprep.subr.mxu0 0.0
        %v762 = vand.u32 %v378, 4294901760
        %763 = vmatpush1.msra.mxu0 %v762
        %764 = vmatprep.subr.mxu0 0.0
        %v765 = vand.u32 %v379, 4294901760
        %766 = vmatpush1.msra.mxu0 %v765
        %767 = vmatprep.subr.mxu0 0.0
        %v768 = vand.u32 %v380, 4294901760
        %769 = vmatpush1.msra.mxu0 %v768
        %770 = vmatprep.subr.mxu0 0.0
        %v771 = vand.u32 %v381, 4294901760
        %772 = vmatpush1.msra.mxu0 %v771
        %773 = vmatprep.subr.mxu0 0.0
        %v774 = vand.u32 %v382, 4294901760
        %775 = vmatpush1.msra.mxu0 %v774
        %776 = vmatprep.subr.mxu0 0.0
        %v777 = vand.u32 %v383, 4294901760
        %778 = vmatpush1.msra.mxu0 %v777
        %779 = vmatprep.subr.mxu0 0.0
        %v780 = vand.u32 %v384, 4294901760
        %781 = vmatpush1.msra.mxu0 %v780
        %782 = vmatprep.subr.mxu0 0.0
        %v783 = vand.u32 %v385, 4294901760
        %784 = vmatpush1.msra.mxu0 %v783
        %785 = vmatprep.subr.mxu0 0.0
        %v786 = vand.u32 %v386, 4294901760
        %787 = vmatpush1.msra.mxu0 %v786
        %788 = vmatprep.subr.mxu0 0.0
        %v789 = vand.u32 %v387, 4294901760
        %790 = vmatpush1.msra.mxu0 %v789
        %791 = vmatprep.subr.mxu0 0.0
        %v792 = vand.u32 %v388, 4294901760
        %793 = vmatpush1.msra.mxu0 %v792
        %794 = vmatprep.subr.mxu0 0.0
        %795 = vmatpush1.msra.mxu0 0.0
        %796 = vmatprep.subr.mxu0 0.0
        %797 = vmatpush1.msra.mxu0 0.0
        %798 = vmatprep.subr.mxu0 0.0
        %799 = vmatpush1.msra.mxu0 0.0
        %800 = vmatprep.subr.mxu0 0.0
        %801 = vmatpush1.msra.mxu0 0.0
        %802 = vmatprep.subr.mxu0 0.0
        %803 = vmatpush1.msra.mxu0 0.0
        %804 = vmatprep.subr.mxu0 0.0
        %805 = vmatpush1.msra.mxu0 0.0
        %806 = vmatprep.subr.mxu0 0.0
        %807 = vmatpush1.msra.mxu0 0.0
        %808 = vmatprep.subr.mxu0 0.0
        %809 = vmatpush1.msra.mxu0 0.0
        %810 = vmatprep.subr.mxu0 0.0
        %811 = vmatpush1.msra.mxu0 0.0
        %812 = vmatprep.subr.mxu0 0.0
        %813 = vmatpush1.msra.mxu0 0.0
        %814 = vmatprep.subr.mxu0 0.0
        %815 = vmatpush1.msra.mxu0 0.0
        %816 = vmatprep.subr.mxu0 0.0
        %817 = vmatpush1.msra.mxu0 0.0
        %818 = vmatprep.subr.mxu0 0.0
        %819 = vmatpush1.msra.mxu0 0.0
        %820 = vmatprep.subr.mxu0 0.0
        %821 = vmatpush1.msra.mxu0 0.0
        %822 = vmatprep.subr.mxu0 0.0
        %823 = vmatpush1.msra.mxu0 0.0
        %824 = vmatprep.subr.mxu0 0.0
        %825 = vmatpush1.msra.mxu0 0.0
        %826 = vmatprep.mubr.f32.mxu0 0.0
        %v827 = vand.u32 %v398, 4294901760
        %v828 = vsub.f32 %v398, %v827
        %v829 = vand.u32 %v828, 4294901760
        %830 = vmatmul.mubr.f32.gmra.mrb[0].mxu0 %v829
        %v831 = vpop.f32.mrb[0].mxu0
        %v832 = vadd.f32 %v743, %v831
        %v833 = vpop.f32.mrb[0].mxu0
        %834 = vdwg.mxu0
        %835 = vmatprep.subr.mxu0 0.0
        %v836 = vand.u32 %v373, 4294901760
        %v837 = vsub.f32 %v373, %v836
        %v838 = vand.u32 %v837, 4294901760
        %839 = vmatpush1.msra.mxu0 %v838
        %840 = vmatprep.subr.mxu0 0.0
        %v841 = vand.u32 %v374, 4294901760
        %v842 = vsub.f32 %v374, %v841
        %v843 = vand.u32 %v842, 4294901760
        %844 = vmatpush1.msra.mxu0 %v843
        %845 = vmatprep.subr.mxu0 0.0
        %v846 = vand.u32 %v375, 4294901760
        %v847 = vsub.f32 %v375, %v846
        %v848 = vand.u32 %v847, 4294901760
        %849 = vmatpush1.msra.mxu0 %v848
        %850 = vmatprep.subr.mxu0 0.0
        %v851 = vand.u32 %v376, 4294901760
        %v852 = vsub.f32 %v376, %v851
        %v853 = vand.u32 %v852, 4294901760
        %854 = vmatpush1.msra.mxu0 %v853
        %855 = vmatprep.subr.mxu0 0.0
        %v856 = vand.u32 %v377, 4294901760
        %v857 = vsub.f32 %v377, %v856
        %v858 = vand.u32 %v857, 4294901760
        %859 = vmatpush1.msra.mxu0 %v858
        %860 = vmatprep.subr.mxu0 0.0
        %v861 = vand.u32 %v378, 4294901760
        %v862 = vsub.f32 %v378, %v861
        %v863 = vand.u32 %v862, 4294901760
        %864 = vmatpush1.msra.mxu0 %v863
        %865 = vmatprep.subr.mxu0 0.0
        %v866 = vand.u32 %v379, 4294901760
        %v867 = vsub.f32 %v379, %v866
        %v868 = vand.u32 %v867, 4294901760
        %869 = vmatpush1.msra.mxu0 %v868
        %870 = vmatprep.subr.mxu0 0.0
        %v871 = vand.u32 %v380, 4294901760
        %v872 = vsub.f32 %v380, %v871
        %v873 = vand.u32 %v872, 4294901760
        %874 = vmatpush1.msra.mxu0 %v873
        %875 = vmatprep.subr.mxu0 0.0
        %v876 = vand.u32 %v381, 4294901760
        %v877 = vsub.f32 %v381, %v876
        %v878 = vand.u32 %v877, 4294901760
        %879 = vmatpush1.msra.mxu0 %v878
        %880 = vmatprep.subr.mxu0 0.0
        %v881 = vand.u32 %v382, 4294901760
        %v882 = vsub.f32 %v382, %v881
        %v883 = vand.u32 %v882, 4294901760
        %884 = vmatpush1.msra.mxu0 %v883
        %885 = vmatprep.subr.mxu0 0.0
        %v886 = vand.u32 %v383, 4294901760
        %v887 = vsub.f32 %v383, %v886
        %v888 = vand.u32 %v887, 4294901760
        %889 = vmatpush1.msra.mxu0 %v888
        %890 = vmatprep.subr.mxu0 0.0
        %v891 = vand.u32 %v384, 4294901760
        %v892 = vsub.f32 %v384, %v891
        %v893 = vand.u32 %v892, 4294901760
        %894 = vmatpush1.msra.mxu0 %v893
        %895 = vmatprep.subr.mxu0 0.0
        %v896 = vand.u32 %v385, 4294901760
        %v897 = vsub.f32 %v385, %v896
        %v898 = vand.u32 %v897, 4294901760
        %899 = vmatpush1.msra.mxu0 %v898
        %900 = vmatprep.subr.mxu0 0.0
        %v901 = vand.u32 %v386, 4294901760
        %v902 = vsub.f32 %v386, %v901
        %v903 = vand.u32 %v902, 4294901760
        %904 = vmatpush1.msra.mxu0 %v903
        %905 = vmatprep.subr.mxu0 0.0
        %v906 = vand.u32 %v387, 4294901760
        %v907 = vsub.f32 %v387, %v906
        %v908 = vand.u32 %v907, 4294901760
        %909 = vmatpush1.msra.mxu0 %v908
        %910 = vmatprep.subr.mxu0 0.0
        %v911 = vand.u32 %v388, 4294901760
        %v912 = vsub.f32 %v388, %v911
        %v913 = vand.u32 %v912, 4294901760
        %914 = vmatpush1.msra.mxu0 %v913
        %915 = vmatprep.subr.mxu0 0.0
        %916 = vmatpush1.msra.mxu0 0.0
        %917 = vmatprep.subr.mxu0 0.0
        %918 = vmatpush1.msra.mxu0 0.0
        %919 = vmatprep.subr.mxu0 0.0
        %920 = vmatpush1.msra.mxu0 0.0
        %921 = vmatprep.subr.mxu0 0.0
        %922 = vmatpush1.msra.mxu0 0.0
        %923 = vmatprep.subr.mxu0 0.0
        %924 = vmatpush1.msra.mxu0 0.0
        %925 = vmatprep.subr.mxu0 0.0
        %926 = vmatpush1.msra.mxu0 0.0
        %927 = vmatprep.subr.mxu0 0.0
        %928 = vmatpush1.msra.mxu0 0.0
        %929 = vmatprep.subr.mxu0 0.0
        %930 = vmatpush1.msra.mxu0 0.0
        %931 = vmatprep.subr.mxu0 0.0
        %932 = vmatpush1.msra.mxu0 0.0
        %933 = vmatprep.subr.mxu0 0.0
        %934 = vmatpush1.msra.mxu0 0.0
        %935 = vmatprep.subr.mxu0 0.0
        %936 = vmatpush1.msra.mxu0 0.0
        %937 = vmatprep.subr.mxu0 0.0
        %938 = vmatpush1.msra.mxu0 0.0
        %939 = vmatprep.subr.mxu0 0.0
        %940 = vmatpush1.msra.mxu0 0.0
        %941 = vmatprep.subr.mxu0 0.0
        %942 = vmatpush1.msra.mxu0 0.0
        %943 = vmatprep.subr.mxu0 0.0
        %944 = vmatpush1.msra.mxu0 0.0
        %945 = vmatprep.subr.mxu0 0.0
        %946 = vmatpush1.msra.mxu0 0.0
        %947 = vmatprep.mubr.f32.mxu0 0.0
        %v948 = vand.u32 %v398, 4294901760
        %949 = vmatmul.mubr.f32.gmra.mrb[0].mxu0 %v948
        %v950 = vpop.f32.mrb[0].mxu0
        %v951 = vadd.f32 %v832, %v950
        %v952 = vpop.f32.mrb[0].mxu0
        %953 = vdwg.mxu0
        %954 = vmatprep.subr.mxu0 0.0
        %v955 = vand.u32 %v373, 4294901760
        %956 = vmatpush1.msra.mxu0 %v955
        %957 = vmatprep.subr.mxu0 0.0
        %v958 = vand.u32 %v374, 4294901760
        %959 = vmatpush1.msra.mxu0 %v958
        %960 = vmatprep.subr.mxu0 0.0
        %v961 = vand.u32 %v375, 4294901760
        %962 = vmatpush1.msra.mxu0 %v961
        %963 = vmatprep.subr.mxu0 0.0
        %v964 = vand.u32 %v376, 4294901760
        %965 = vmatpush1.msra.mxu0 %v964
        %966 = vmatprep.subr.mxu0 0.0
        %v967 = vand.u32 %v377, 4294901760
        %968 = vmatpush1.msra.mxu0 %v967
        %969 = vmatprep.subr.mxu0 0.0
        %v970 = vand.u32 %v378, 4294901760
        %971 = vmatpush1.msra.mxu0 %v970
        %972 = vmatprep.subr.mxu0 0.0
        %v973 = vand.u32 %v379, 4294901760
        %974 = vmatpush1.msra.mxu0 %v973
        %975 = vmatprep.subr.mxu0 0.0
        %v976 = vand.u32 %v380, 4294901760
        %977 = vmatpush1.msra.mxu0 %v976
        %978 = vmatprep.subr.mxu0 0.0
        %v979 = vand.u32 %v381, 4294901760
        %980 = vmatpush1.msra.mxu0 %v979
        %981 = vmatprep.subr.mxu0 0.0
        %v982 = vand.u32 %v382, 4294901760
        %983 = vmatpush1.msra.mxu0 %v982
        %984 = vmatprep.subr.mxu0 0.0
        %v985 = vand.u32 %v383, 4294901760
        %986 = vmatpush1.msra.mxu0 %v985
        %987 = vmatprep.subr.mxu0 0.0
        %v988 = vand.u32 %v384, 4294901760
        %989 = vmatpush1.msra.mxu0 %v988
        %990 = vmatprep.subr.mxu0 0.0
        %v991 = vand.u32 %v385, 4294901760
        %992 = vmatpush1.msra.mxu0 %v991
        %993 = vmatprep.subr.mxu0 0.0
        %v994 = vand.u32 %v386, 4294901760
        %995 = vmatpush1.msra.mxu0 %v994
        %996 = vmatprep.subr.mxu0 0.0
        %v997 = vand.u32 %v387, 4294901760
        %998 = vmatpush1.msra.mxu0 %v997
        %999 = vmatprep.subr.mxu0 0.0
        %v1000 = vand.u32 %v388, 4294901760
        %1001 = vmatpush1.msra.mxu0 %v1000
        %1002 = vmatprep.subr.mxu0 0.0
        %1003 = vmatpush1.msra.mxu0 0.0
        %1004 = vmatprep.subr.mxu0 0.0
        %1005 = vmatpush1.msra.mxu0 0.0
        %1006 = vmatprep.subr.mxu0 0.0
        %1007 = vmatpush1.msra.mxu0 0.0
        %1008 = vmatprep.subr.mxu0 0.0
        %1009 = vmatpush1.msra.mxu0 0.0
        %1010 = vmatprep.subr.mxu0 0.0
        %1011 = vmatpush1.msra.mxu0 0.0
        %1012 = vmatprep.subr.mxu0 0.0
        %1013 = vmatpush1.msra.mxu0 0.0
        %1014 = vmatprep.subr.mxu0 0.0
        %1015 = vmatpush1.msra.mxu0 0.0
        %1016 = vmatprep.subr.mxu0 0.0
        %1017 = vmatpush1.msra.mxu0 0.0
        %1018 = vmatprep.subr.mxu0 0.0
        %1019 = vmatpush1.msra.mxu0 0.0
        %1020 = vmatprep.subr.mxu0 0.0
        %1021 = vmatpush1.msra.mxu0 0.0
        %1022 = vmatprep.subr.mxu0 0.0
        %1023 = vmatpush1.msra.mxu0 0.0
        %1024 = vmatprep.subr.mxu0 0.0
        %1025 = vmatpush1.msra.mxu0 0.0
        %1026 = vmatprep.subr.mxu0 0.0
        %1027 = vmatpush1.msra.mxu0 0.0
        %1028 = vmatprep.subr.mxu0 0.0
        %1029 = vmatpush1.msra.mxu0 0.0
        %1030 = vmatprep.subr.mxu0 0.0
        %1031 = vmatpush1.msra.mxu0 0.0
        %1032 = vmatprep.subr.mxu0 0.0
        %1033 = vmatpush1.msra.mxu0 0.0
        %1034 = vmatprep.mubr.f32.mxu0 0.0
        %v1035 = vand.u32 %v398, 4294901760
        %1036 = vmatmul.mubr.f32.gmra.mrb[0].mxu0 %v1035
        %v1037 = vpop.f32.mrb[0].mxu0
        %v1038 = vadd.f32 %v951, %v1037
        %v1039 = vpop.f32.mrb[0].mxu0
        %1040 = vdwg.mxu0
        %v1043 = vcombine.low %v353, %v354
        %v1045 = vunpack.c.l.s4 1983009808
        %v1046 = vunpack.c.0.s8 %v1045
        %v1047 = vlaneseq
        %v1048 = vshrl.u32 %v1047, 7
        %v1049 = vsub.s32 %v1046, %v1048
        %v1050 = vrot.slane %v1043, %v1049
        %1052 = vmatprep.subr.mxu0 0.0
        %v1053 = vand.u32 %v357, 4294901760
        %1054 = vmatpush1.msra.mxu0 %v1053
        %1055 = vmatprep.subr.mxu0 0.0
        %v1056 = vand.u32 %v358, 4294901760
        %1057 = vmatpush1.msra.mxu0 %v1056
        %1058 = vmatprep.subr.mxu0 0.0
        %v1059 = vand.u32 %v359, 4294901760
        %1060 = vmatpush1.msra.mxu0 %v1059
        %1061 = vmatprep.subr.mxu0 0.0
        %v1062 = vand.u32 %v360, 4294901760
        %1063 = vmatpush1.msra.mxu0 %v1062
        %1064 = vmatprep.subr.mxu0 0.0
        %v1065 = vand.u32 %v361, 4294901760
        %1066 = vmatpush1.msra.mxu0 %v1065
        %1067 = vmatprep.subr.mxu0 0.0
        %v1068 = vand.u32 %v362, 4294901760
        %1069 = vmatpush1.msra.mxu0 %v1068
        %1070 = vmatprep.subr.mxu0 0.0
        %v1071 = vand.u32 %v363, 4294901760
        %1072 = vmatpush1.msra.mxu0 %v1071
        %1073 = vmatprep.subr.mxu0 0.0
        %v1074 = vand.u32 %v364, 4294901760
        %1075 = vmatpush1.msra.mxu0 %v1074
        %1076 = vmatprep.subr.mxu0 0.0
        %v1077 = vand.u32 %v365, 4294901760
        %1078 = vmatpush1.msra.mxu0 %v1077
        %1079 = vmatprep.subr.mxu0 0.0
        %v1080 = vand.u32 %v366, 4294901760
        %1081 = vmatpush1.msra.mxu0 %v1080
        %1082 = vmatprep.subr.mxu0 0.0
        %v1083 = vand.u32 %v367, 4294901760
        %1084 = vmatpush1.msra.mxu0 %v1083
        %1085 = vmatprep.subr.mxu0 0.0
        %v1086 = vand.u32 %v368, 4294901760
        %1087 = vmatpush1.msra.mxu0 %v1086
        %1088 = vmatprep.subr.mxu0 0.0
        %v1089 = vand.u32 %v369, 4294901760
        %1090 = vmatpush1.msra.mxu0 %v1089
        %1091 = vmatprep.subr.mxu0 0.0
        %v1092 = vand.u32 %v370, 4294901760
        %1093 = vmatpush1.msra.mxu0 %v1092
        %1094 = vmatprep.subr.mxu0 0.0
        %v1095 = vand.u32 %v371, 4294901760
        %1096 = vmatpush1.msra.mxu0 %v1095
        %1097 = vmatprep.subr.mxu0 0.0
        %v1098 = vand.u32 %v372, 4294901760
        %1099 = vmatpush1.msra.mxu0 %v1098
        %1100 = vmatprep.subr.mxu0 0.0
        %1101 = vmatpush1.msra.mxu0 0.0
        %1102 = vmatprep.subr.mxu0 0.0
        %1103 = vmatpush1.msra.mxu0 0.0
        %1104 = vmatprep.subr.mxu0 0.0
        %1105 = vmatpush1.msra.mxu0 0.0
        %1106 = vmatprep.subr.mxu0 0.0
        %1107 = vmatpush1.msra.mxu0 0.0
        %1108 = vmatprep.subr.mxu0 0.0
        %1109 = vmatpush1.msra.mxu0 0.0
        %1110 = vmatprep.subr.mxu0 0.0
        %1111 = vmatpush1.msra.mxu0 0.0
        %1112 = vmatprep.subr.mxu0 0.0
        %1113 = vmatpush1.msra.mxu0 0.0
        %1114 = vmatprep.subr.mxu0 0.0
        %1115 = vmatpush1.msra.mxu0 0.0
        %1116 = vmatprep.subr.mxu0 0.0
        %1117 = vmatpush1.msra.mxu0 0.0
        %1118 = vmatprep.subr.mxu0 0.0
        %1119 = vmatpush1.msra.mxu0 0.0
        %1120 = vmatprep.subr.mxu0 0.0
        %1121 = vmatpush1.msra.mxu0 0.0
        %1122 = vmatprep.subr.mxu0 0.0
        %1123 = vmatpush1.msra.mxu0 0.0
        %1124 = vmatprep.subr.mxu0 0.0
        %1125 = vmatpush1.msra.mxu0 0.0
        %1126 = vmatprep.subr.mxu0 0.0
        %1127 = vmatpush1.msra.mxu0 0.0
        %1128 = vmatprep.subr.mxu0 0.0
        %1129 = vmatpush1.msra.mxu0 0.0
        %1130 = vmatprep.subr.mxu0 0.0
        %1131 = vmatpush1.msra.mxu0 0.0
        %1132 = vmatprep.mubr.f32.mxu0 0.0
        %v1133 = vand.u32 %v1050, 4294901760
        %v1134 = vsub.f32 %v1050, %v1133
        %v1135 = vand.u32 %v1134, 4294901760
        %v1136 = vsub.f32 %v1134, %v1135
        %v1137 = vand.u32 %v1136, 4294901760
        %1138 = vmatmul.mubr.f32.gmra.mrb[0].mxu0 %v1137
        %v1139 = vpop.f32.mrb[0].mxu0
        %v1140 = vadd.f32 %v1038, %v1139
        %v1141 = vpop.f32.mrb[0].mxu0
        %1142 = vdwg.mxu0
        %1143 = vmatprep.subr.mxu0 0.0
        %v1144 = vand.u32 %v357, 4294901760
        %v1145 = vsub.f32 %v357, %v1144
        %v1146 = vand.u32 %v1145, 4294901760
        %v1147 = vsub.f32 %v1145, %v1146
        %v1148 = vand.u32 %v1147, 4294901760
        %1149 = vmatpush1.msra.mxu0 %v1148
        %1150 = vmatprep.subr.mxu0 0.0
        %v1151 = vand.u32 %v358, 4294901760
        %v1152 = vsub.f32 %v358, %v1151
        %v1153 = vand.u32 %v1152, 4294901760
        %v1154 = vsub.f32 %v1152, %v1153
        %v1155 = vand.u32 %v1154, 4294901760
        %1156 = vmatpush1.msra.mxu0 %v1155
        %1157 = vmatprep.subr.mxu0 0.0
        %v1158 = vand.u32 %v359, 4294901760
        %v1159 = vsub.f32 %v359, %v1158
        %v1160 = vand.u32 %v1159, 4294901760
        %v1161 = vsub.f32 %v1159, %v1160
        %v1162 = vand.u32 %v1161, 4294901760
        %1163 = vmatpush1.msra.mxu0 %v1162
        %1164 = vmatprep.subr.mxu0 0.0
        %v1165 = vand.u32 %v360, 4294901760
        %v1166 = vsub.f32 %v360, %v1165
        %v1167 = vand.u32 %v1166, 4294901760
        %v1168 = vsub.f32 %v1166, %v1167
        %v1169 = vand.u32 %v1168, 4294901760
        %1170 = vmatpush1.msra.mxu0 %v1169
        %1171 = vmatprep.subr.mxu0 0.0
        %v1172 = vand.u32 %v361, 4294901760
        %v1173 = vsub.f32 %v361, %v1172
        %v1174 = vand.u32 %v1173, 4294901760
        %v1175 = vsub.f32 %v1173, %v1174
        %v1176 = vand.u32 %v1175, 4294901760
        %1177 = vmatpush1.msra.mxu0 %v1176
        %1178 = vmatprep.subr.mxu0 0.0
        %v1179 = vand.u32 %v362, 4294901760
        %v1180 = vsub.f32 %v362, %v1179
        %v1181 = vand.u32 %v1180, 4294901760
        %v1182 = vsub.f32 %v1180, %v1181
        %v1183 = vand.u32 %v1182, 4294901760
        %1184 = vmatpush1.msra.mxu0 %v1183
        %1185 = vmatprep.subr.mxu0 0.0
        %v1186 = vand.u32 %v363, 4294901760
        %v1187 = vsub.f32 %v363, %v1186
        %v1188 = vand.u32 %v1187, 4294901760
        %v1189 = vsub.f32 %v1187, %v1188
        %v1190 = vand.u32 %v1189, 4294901760
        %1191 = vmatpush1.msra.mxu0 %v1190
        %1192 = vmatprep.subr.mxu0 0.0
        %v1193 = vand.u32 %v364, 4294901760
        %v1194 = vsub.f32 %v364, %v1193
        %v1195 = vand.u32 %v1194, 4294901760
        %v1196 = vsub.f32 %v1194, %v1195
        %v1197 = vand.u32 %v1196, 4294901760
        %1198 = vmatpush1.msra.mxu0 %v1197
        %1199 = vmatprep.subr.mxu0 0.0
        %v1200 = vand.u32 %v365, 4294901760
        %v1201 = vsub.f32 %v365, %v1200
        %v1202 = vand.u32 %v1201, 4294901760
        %v1203 = vsub.f32 %v1201, %v1202
        %v1204 = vand.u32 %v1203, 4294901760
        %1205 = vmatpush1.msra.mxu0 %v1204
        %1206 = vmatprep.subr.mxu0 0.0
        %v1207 = vand.u32 %v366, 4294901760
        %v1208 = vsub.f32 %v366, %v1207
        %v1209 = vand.u32 %v1208, 4294901760
        %v1210 = vsub.f32 %v1208, %v1209
        %v1211 = vand.u32 %v1210, 4294901760
        %1212 = vmatpush1.msra.mxu0 %v1211
        %1213 = vmatprep.subr.mxu0 0.0
        %v1214 = vand.u32 %v367, 4294901760
        %v1215 = vsub.f32 %v367, %v1214
        %v1216 = vand.u32 %v1215, 4294901760
        %v1217 = vsub.f32 %v1215, %v1216
        %v1218 = vand.u32 %v1217, 4294901760
        %1219 = vmatpush1.msra.mxu0 %v1218
        %1220 = vmatprep.subr.mxu0 0.0
        %v1221 = vand.u32 %v368, 4294901760
        %v1222 = vsub.f32 %v368, %v1221
        %v1223 = vand.u32 %v1222, 4294901760
        %v1224 = vsub.f32 %v1222, %v1223
        %v1225 = vand.u32 %v1224, 4294901760
        %1226 = vmatpush1.msra.mxu0 %v1225
        %1227 = vmatprep.subr.mxu0 0.0
        %v1228 = vand.u32 %v369, 4294901760
        %v1229 = vsub.f32 %v369, %v1228
        %v1230 = vand.u32 %v1229, 4294901760
        %v1231 = vsub.f32 %v1229, %v1230
        %v1232 = vand.u32 %v1231, 4294901760
        %1233 = vmatpush1.msra.mxu0 %v1232
        %1234 = vmatprep.subr.mxu0 0.0
        %v1235 = vand.u32 %v370, 4294901760
        %v1236 = vsub.f32 %v370, %v1235
        %v1237 = vand.u32 %v1236, 4294901760
        %v1238 = vsub.f32 %v1236, %v1237
        %v1239 = vand.u32 %v1238, 4294901760
        %1240 = vmatpush1.msra.mxu0 %v1239
        %1241 = vmatprep.subr.mxu0 0.0
        %v1242 = vand.u32 %v371, 4294901760
        %v1243 = vsub.f32 %v371, %v1242
        %v1244 = vand.u32 %v1243, 4294901760
        %v1245 = vsub.f32 %v1243, %v1244
        %v1246 = vand.u32 %v1245, 4294901760
        %1247 = vmatpush1.msra.mxu0 %v1246
        %1248 = vmatprep.subr.mxu0 0.0
        %v1249 = vand.u32 %v372, 4294901760
        %v1250 = vsub.f32 %v372, %v1249
        %v1251 = vand.u32 %v1250, 4294901760
        %v1252 = vsub.f32 %v1250, %v1251
        %v1253 = vand.u32 %v1252, 4294901760
        %1254 = vmatpush1.msra.mxu0 %v1253
        %1255 = vmatprep.subr.mxu0 0.0
        %1256 = vmatpush1.msra.mxu0 0.0
        %1257 = vmatprep.subr.mxu0 0.0
        %1258 = vmatpush1.msra.mxu0 0.0
        %1259 = vmatprep.subr.mxu0 0.0
        %1260 = vmatpush1.msra.mxu0 0.0
        %1261 = vmatprep.subr.mxu0 0.0
        %1262 = vmatpush1.msra.mxu0 0.0
        %1263 = vmatprep.subr.mxu0 0.0
        %1264 = vmatpush1.msra.mxu0 0.0
        %1265 = vmatprep.subr.mxu0 0.0
        %1266 = vmatpush1.msra.mxu0 0.0
        %1267 = vmatprep.subr.mxu0 0.0
        %1268 = vmatpush1.msra.mxu0 0.0
        %1269 = vmatprep.subr.mxu0 0.0
        %1270 = vmatpush1.msra.mxu0 0.0
        %1271 = vmatprep.subr.mxu0 0.0
        %1272 = vmatpush1.msra.mxu0 0.0
        %1273 = vmatprep.subr.mxu0 0.0
        %1274 = vmatpush1.msra.mxu0 0.0
        %1275 = vmatprep.subr.mxu0 0.0
        %1276 = vmatpush1.msra.mxu0 0.0
        %1277 = vmatprep.subr.mxu0 0.0
        %1278 = vmatpush1.msra.mxu0 0.0
        %1279 = vmatprep.subr.mxu0 0.0
        %1280 = vmatpush1.msra.mxu0 0.0
        %1281 = vmatprep.subr.mxu0 0.0
        %1282 = vmatpush1.msra.mxu0 0.0
        %1283 = vmatprep.subr.mxu0 0.0
        %1284 = vmatpush1.msra.mxu0 0.0
        %1285 = vmatprep.subr.mxu0 0.0
        %1286 = vmatpush1.msra.mxu0 0.0
        %1287 = vmatprep.mubr.f32.mxu0 0.0
        %v1288 = vand.u32 %v1050, 4294901760
        %1289 = vmatmul.mubr.f32.gmra.mrb[0].mxu0 %v1288
        %v1290 = vpop.f32.mrb[0].mxu0
        %v1291 = vadd.f32 %v1140, %v1290
        %v1292 = vpop.f32.mrb[0].mxu0
        %1293 = vdwg.mxu0
        %1294 = vmatprep.subr.mxu0 0.0
        %v1295 = vand.u32 %v357, 4294901760
        %v1296 = vsub.f32 %v357, %v1295
        %1297 = vmatpush1.msra.mxu0 %v1296
        %1298 = vmatprep.subr.mxu0 0.0
        %v1299 = vand.u32 %v358, 4294901760
        %v1300 = vsub.f32 %v358, %v1299
        %1301 = vmatpush1.msra.mxu0 %v1300
        %1302 = vmatprep.subr.mxu0 0.0
        %v1303 = vand.u32 %v359, 4294901760
        %v1304 = vsub.f32 %v359, %v1303
        %1305 = vmatpush1.msra.mxu0 %v1304
        %1306 = vmatprep.subr.mxu0 0.0
        %v1307 = vand.u32 %v360, 4294901760
        %v1308 = vsub.f32 %v360, %v1307
        %1309 = vmatpush1.msra.mxu0 %v1308
        %1310 = vmatprep.subr.mxu0 0.0
        %v1311 = vand.u32 %v361, 4294901760
        %v1312 = vsub.f32 %v361, %v1311
        %1313 = vmatpush1.msra.mxu0 %v1312
        %1314 = vmatprep.subr.mxu0 0.0
        %v1315 = vand.u32 %v362, 4294901760
        %v1316 = vsub.f32 %v362, %v1315
        %1317 = vmatpush1.msra.mxu0 %v1316
        %1318 = vmatprep.subr.mxu0 0.0
        %v1319 = vand.u32 %v363, 4294901760
        %v1320 = vsub.f32 %v363, %v1319
        %1321 = vmatpush1.msra.mxu0 %v1320
        %1322 = vmatprep.subr.mxu0 0.0
        %v1323 = vand.u32 %v364, 4294901760
        %v1324 = vsub.f32 %v364, %v1323
        %1325 = vmatpush1.msra.mxu0 %v1324
        %1326 = vmatprep.subr.mxu0 0.0
        %v1327 = vand.u32 %v365, 4294901760
        %v1328 = vsub.f32 %v365, %v1327
        %1329 = vmatpush1.msra.mxu0 %v1328
        %1330 = vmatprep.subr.mxu0 0.0
        %v1331 = vand.u32 %v366, 4294901760
        %v1332 = vsub.f32 %v366, %v1331
        %1333 = vmatpush1.msra.mxu0 %v1332
        %1334 = vmatprep.subr.mxu0 0.0
        %v1335 = vand.u32 %v367, 4294901760
        %v1336 = vsub.f32 %v367, %v1335
        %1337 = vmatpush1.msra.mxu0 %v1336
        %1338 = vmatprep.subr.mxu0 0.0
        %v1339 = vand.u32 %v368, 4294901760
        %v1340 = vsub.f32 %v368, %v1339
        %1341 = vmatpush1.msra.mxu0 %v1340
        %1342 = vmatprep.subr.mxu0 0.0
        %v1343 = vand.u32 %v369, 4294901760
        %v1344 = vsub.f32 %v369, %v1343
        %1345 = vmatpush1.msra.mxu0 %v1344
        %1346 = vmatprep.subr.mxu0 0.0
        %v1347 = vand.u32 %v370, 4294901760
        %v1348 = vsub.f32 %v370, %v1347
        %1349 = vmatpush1.msra.mxu0 %v1348
        %1350 = vmatprep.subr.mxu0 0.0
        %v1351 = vand.u32 %v371, 4294901760
        %v1352 = vsub.f32 %v371, %v1351
        %1353 = vmatpush1.msra.mxu0 %v1352
        %1354 = vmatprep.subr.mxu0 0.0
        %v1355 = vand.u32 %v372, 4294901760
        %v1356 = vsub.f32 %v372, %v1355
        %1357 = vmatpush1.msra.mxu0 %v1356
        %1358 = vmatprep.subr.mxu0 0.0
        %1359 = vmatpush1.msra.mxu0 0.0
        %1360 = vmatprep.subr.mxu0 0.0
        %1361 = vmatpush1.msra.mxu0 0.0
        %1362 = vmatprep.subr.mxu0 0.0
        %1363 = vmatpush1.msra.mxu0 0.0
        %1364 = vmatprep.subr.mxu0 0.0
        %1365 = vmatpush1.msra.mxu0 0.0
        %1366 = vmatprep.subr.mxu0 0.0
        %1367 = vmatpush1.msra.mxu0 0.0
        %1368 = vmatprep.subr.mxu0 0.0
        %1369 = vmatpush1.msra.mxu0 0.0
        %1370 = vmatprep.subr.mxu0 0.0
        %1371 = vmatpush1.msra.mxu0 0.0
        %1372 = vmatprep.subr.mxu0 0.0
        %1373 = vmatpush1.msra.mxu0 0.0
        %1374 = vmatprep.subr.mxu0 0.0
        %1375 = vmatpush1.msra.mxu0 0.0
        %1376 = vmatprep.subr.mxu0 0.0
        %1377 = vmatpush1.msra.mxu0 0.0
        %1378 = vmatprep.subr.mxu0 0.0
        %1379 = vmatpush1.msra.mxu0 0.0
        %1380 = vmatprep.subr.mxu0 0.0
        %1381 = vmatpush1.msra.mxu0 0.0
        %1382 = vmatprep.subr.mxu0 0.0
        %1383 = vmatpush1.msra.mxu0 0.0
        %1384 = vmatprep.subr.mxu0 0.0
        %1385 = vmatpush1.msra.mxu0 0.0
        %1386 = vmatprep.subr.mxu0 0.0
        %1387 = vmatpush1.msra.mxu0 0.0
        %1388 = vmatprep.subr.mxu0 0.0
        %1389 = vmatpush1.msra.mxu0 0.0
        %1390 = vmatprep.mubr.f32.mxu0 0.0
        %v1391 = vand.u32 %v1050, 4294901760
        %v1392 = vsub.f32 %v1050, %v1391
        %1393 = vmatmul.mubr.f32.gmra.mrb[0].mxu0 %v1392
        %v1394 = vpop.f32.mrb[0].mxu0
        %v1395 = vadd.f32 %v1291, %v1394
        %v1396 = vpop.f32.mrb[0].mxu0
        %1397 = vdwg.mxu0
        %1398 = vmatprep.subr.mxu0 0.0
        %v1399 = vand.u32 %v357, 4294901760
        %1400 = vmatpush1.msra.mxu0 %v1399
        %1401 = vmatprep.subr.mxu0 0.0
        %v1402 = vand.u32 %v358, 4294901760
        %1403 = vmatpush1.msra.mxu0 %v1402
        %1404 = vmatprep.subr.mxu0 0.0
        %v1405 = vand.u32 %v359, 4294901760
        %1406 = vmatpush1.msra.mxu0 %v1405
        %1407 = vmatprep.subr.mxu0 0.0
        %v1408 = vand.u32 %v360, 4294901760
        %1409 = vmatpush1.msra.mxu0 %v1408
        %1410 = vmatprep.subr.mxu0 0.0
        %v1411 = vand.u32 %v361, 4294901760
        %1412 = vmatpush1.msra.mxu0 %v1411
        %1413 = vmatprep.subr.mxu0 0.0
        %v1414 = vand.u32 %v362, 4294901760
        %1415 = vmatpush1.msra.mxu0 %v1414
        %1416 = vmatprep.subr.mxu0 0.0
        %v1417 = vand.u32 %v363, 4294901760
        %1418 = vmatpush1.msra.mxu0 %v1417
        %1419 = vmatprep.subr.mxu0 0.0
        %v1420 = vand.u32 %v364, 4294901760
        %1421 = vmatpush1.msra.mxu0 %v1420
        %1422 = vmatprep.subr.mxu0 0.0
        %v1423 = vand.u32 %v365, 4294901760
        %1424 = vmatpush1.msra.mxu0 %v1423
        %1425 = vmatprep.subr.mxu0 0.0
        %v1426 = vand.u32 %v366, 4294901760
        %1427 = vmatpush1.msra.mxu0 %v1426
        %1428 = vmatprep.subr.mxu0 0.0
        %v1429 = vand.u32 %v367, 4294901760
        %1430 = vmatpush1.msra.mxu0 %v1429
        %1431 = vmatprep.subr.mxu0 0.0
        %v1432 = vand.u32 %v368, 4294901760
        %1433 = vmatpush1.msra.mxu0 %v1432
        %1434 = vmatprep.subr.mxu0 0.0
        %v1435 = vand.u32 %v369, 4294901760
        %1436 = vmatpush1.msra.mxu0 %v1435
        %1437 = vmatprep.subr.mxu0 0.0
        %v1438 = vand.u32 %v370, 4294901760
        %1439 = vmatpush1.msra.mxu0 %v1438
        %1440 = vmatprep.subr.mxu0 0.0
        %v1441 = vand.u32 %v371, 4294901760
        %1442 = vmatpush1.msra.mxu0 %v1441
        %1443 = vmatprep.subr.mxu0 0.0
        %v1444 = vand.u32 %v372, 4294901760
        %1445 = vmatpush1.msra.mxu0 %v1444
        %1446 = vmatprep.subr.mxu0 0.0
        %1447 = vmatpush1.msra.mxu0 0.0
        %1448 = vmatprep.subr.mxu0 0.0
        %1449 = vmatpush1.msra.mxu0 0.0
        %1450 = vmatprep.subr.mxu0 0.0
        %1451 = vmatpush1.msra.mxu0 0.0
        %1452 = vmatprep.subr.mxu0 0.0
        %1453 = vmatpush1.msra.mxu0 0.0
        %1454 = vmatprep.subr.mxu0 0.0
        %1455 = vmatpush1.msra.mxu0 0.0
        %1456 = vmatprep.subr.mxu0 0.0
        %1457 = vmatpush1.msra.mxu0 0.0
        %1458 = vmatprep.subr.mxu0 0.0
        %1459 = vmatpush1.msra.mxu0 0.0
        %1460 = vmatprep.subr.mxu0 0.0
        %1461 = vmatpush1.msra.mxu0 0.0
        %1462 = vmatprep.subr.mxu0 0.0
        %1463 = vmatpush1.msra.mxu0 0.0
        %1464 = vmatprep.subr.mxu0 0.0
        %1465 = vmatpush1.msra.mxu0 0.0
        %1466 = vmatprep.subr.mxu0 0.0
        %1467 = vmatpush1.msra.mxu0 0.0
        %1468 = vmatprep.subr.mxu0 0.0
        %1469 = vmatpush1.msra.mxu0 0.0
        %1470 = vmatprep.subr.mxu0 0.0
        %1471 = vmatpush1.msra.mxu0 0.0
        %1472 = vmatprep.subr.mxu0 0.0
        %1473 = vmatpush1.msra.mxu0 0.0
        %1474 = vmatprep.subr.mxu0 0.0
        %1475 = vmatpush1.msra.mxu0 0.0
        %1476 = vmatprep.subr.mxu0 0.0
        %1477 = vmatpush1.msra.mxu0 0.0
        %1478 = vmatprep.mubr.f32.mxu0 0.0
        %v1479 = vand.u32 %v1050, 4294901760
        %v1480 = vsub.f32 %v1050, %v1479
        %v1481 = vand.u32 %v1480, 4294901760
        %1482 = vmatmul.mubr.f32.gmra.mrb[0].mxu0 %v1481
        %v1483 = vpop.f32.mrb[0].mxu0
        %v1484 = vadd.f32 %v1395, %v1483
        %v1485 = vpop.f32.mrb[0].mxu0
        %1486 = vdwg.mxu0
        %1487 = vmatprep.subr.mxu0 0.0
        %v1488 = vand.u32 %v357, 4294901760
        %v1489 = vsub.f32 %v357, %v1488
        %v1490 = vand.u32 %v1489, 4294901760
        %1491 = vmatpush1.msra.mxu0 %v1490
        %1492 = vmatprep.subr.mxu0 0.0
        %v1493 = vand.u32 %v358, 4294901760
        %v1494 = vsub.f32 %v358, %v1493
        %v1495 = vand.u32 %v1494, 4294901760
        %1496 = vmatpush1.msra.mxu0 %v1495
        %1497 = vmatprep.subr.mxu0 0.0
        %v1498 = vand.u32 %v359, 4294901760
        %v1499 = vsub.f32 %v359, %v1498
        %v1500 = vand.u32 %v1499, 4294901760
        %1501 = vmatpush1.msra.mxu0 %v1500
        %1502 = vmatprep.subr.mxu0 0.0
        %v1503 = vand.u32 %v360, 4294901760
        %v1504 = vsub.f32 %v360, %v1503
        %v1505 = vand.u32 %v1504, 4294901760
        %1506 = vmatpush1.msra.mxu0 %v1505
        %1507 = vmatprep.subr.mxu0 0.0
        %v1508 = vand.u32 %v361, 4294901760
        %v1509 = vsub.f32 %v361, %v1508
        %v1510 = vand.u32 %v1509, 4294901760
        %1511 = vmatpush1.msra.mxu0 %v1510
        %1512 = vmatprep.subr.mxu0 0.0
        %v1513 = vand.u32 %v362, 4294901760
        %v1514 = vsub.f32 %v362, %v1513
        %v1515 = vand.u32 %v1514, 4294901760
        %1516 = vmatpush1.msra.mxu0 %v1515
        %1517 = vmatprep.subr.mxu0 0.0
        %v1518 = vand.u32 %v363, 4294901760
        %v1519 = vsub.f32 %v363, %v1518
        %v1520 = vand.u32 %v1519, 4294901760
        %1521 = vmatpush1.msra.mxu0 %v1520
        %1522 = vmatprep.subr.mxu0 0.0
        %v1523 = vand.u32 %v364, 4294901760
        %v1524 = vsub.f32 %v364, %v1523
        %v1525 = vand.u32 %v1524, 4294901760
        %1526 = vmatpush1.msra.mxu0 %v1525
        %1527 = vmatprep.subr.mxu0 0.0
        %v1528 = vand.u32 %v365, 4294901760
        %v1529 = vsub.f32 %v365, %v1528
        %v1530 = vand.u32 %v1529, 4294901760
        %1531 = vmatpush1.msra.mxu0 %v1530
        %1532 = vmatprep.subr.mxu0 0.0
        %v1533 = vand.u32 %v366, 4294901760
        %v1534 = vsub.f32 %v366, %v1533
        %v1535 = vand.u32 %v1534, 4294901760
        %1536 = vmatpush1.msra.mxu0 %v1535
        %1537 = vmatprep.subr.mxu0 0.0
        %v1538 = vand.u32 %v367, 4294901760
        %v1539 = vsub.f32 %v367, %v1538
        %v1540 = vand.u32 %v1539, 4294901760
        %1541 = vmatpush1.msra.mxu0 %v1540
        %1542 = vmatprep.subr.mxu0 0.0
        %v1543 = vand.u32 %v368, 4294901760
        %v1544 = vsub.f32 %v368, %v1543
        %v1545 = vand.u32 %v1544, 4294901760
        %1546 = vmatpush1.msra.mxu0 %v1545
        %1547 = vmatprep.subr.mxu0 0.0
        %v1548 = vand.u32 %v369, 4294901760
        %v1549 = vsub.f32 %v369, %v1548
        %v1550 = vand.u32 %v1549, 4294901760
        %1551 = vmatpush1.msra.mxu0 %v1550
        %1552 = vmatprep.subr.mxu0 0.0
        %v1553 = vand.u32 %v370, 4294901760
        %v1554 = vsub.f32 %v370, %v1553
        %v1555 = vand.u32 %v1554, 4294901760
        %1556 = vmatpush1.msra.mxu0 %v1555
        %1557 = vmatprep.subr.mxu0 0.0
        %v1558 = vand.u32 %v371, 4294901760
        %v1559 = vsub.f32 %v371, %v1558
        %v1560 = vand.u32 %v1559, 4294901760
        %1561 = vmatpush1.msra.mxu0 %v1560
        %1562 = vmatprep.subr.mxu0 0.0
        %v1563 = vand.u32 %v372, 4294901760
        %v1564 = vsub.f32 %v372, %v1563
        %v1565 = vand.u32 %v1564, 4294901760
        %1566 = vmatpush1.msra.mxu0 %v1565
        %1567 = vmatprep.subr.mxu0 0.0
        %1568 = vmatpush1.msra.mxu0 0.0
        %1569 = vmatprep.subr.mxu0 0.0
        %1570 = vmatpush1.msra.mxu0 0.0
        %1571 = vmatprep.subr.mxu0 0.0
        %1572 = vmatpush1.msra.mxu0 0.0
        %1573 = vmatprep.subr.mxu0 0.0
        %1574 = vmatpush1.msra.mxu0 0.0
        %1575 = vmatprep.subr.mxu0 0.0
        %1576 = vmatpush1.msra.mxu0 0.0
        %1577 = vmatprep.subr.mxu0 0.0
        %1578 = vmatpush1.msra.mxu0 0.0
        %1579 = vmatprep.subr.mxu0 0.0
        %1580 = vmatpush1.msra.mxu0 0.0
        %1581 = vmatprep.subr.mxu0 0.0
        %1582 = vmatpush1.msra.mxu0 0.0
        %1583 = vmatprep.subr.mxu0 0.0
        %1584 = vmatpush1.msra.mxu0 0.0
        %1585 = vmatprep.subr.mxu0 0.0
        %1586 = vmatpush1.msra.mxu0 0.0
        %1587 = vmatprep.subr.mxu0 0.0
        %1588 = vmatpush1.msra.mxu0 0.0
        %1589 = vmatprep.subr.mxu0 0.0
        %1590 = vmatpush1.msra.mxu0 0.0
        %1591 = vmatprep.subr.mxu0 0.0
        %1592 = vmatpush1.msra.mxu0 0.0
        %1593 = vmatprep.subr.mxu0 0.0
        %1594 = vmatpush1.msra.mxu0 0.0
        %1595 = vmatprep.subr.mxu0 0.0
        %1596 = vmatpush1.msra.mxu0 0.0
        %1597 = vmatprep.subr.mxu0 0.0
        %1598 = vmatpush1.msra.mxu0 0.0
        %1599 = vmatprep.mubr.f32.mxu0 0.0
        %v1600 = vand.u32 %v1050, 4294901760
        %1601 = vmatmul.mubr.f32.gmra.mrb[0].mxu0 %v1600
        %v1602 = vpop.f32.mrb[0].mxu0
        %v1603 = vadd.f32 %v1484, %v1602
        %v1604 = vpop.f32.mrb[0].mxu0
        %1605 = vdwg.mxu0
        %1606 = vmatprep.subr.mxu0 0.0
        %v1607 = vand.u32 %v357, 4294901760
        %1608 = vmatpush1.msra.mxu0 %v1607
        %1609 = vmatprep.subr.mxu0 0.0
        %v1610 = vand.u32 %v358, 4294901760
        %1611 = vmatpush1.msra.mxu0 %v1610
        %1612 = vmatprep.subr.mxu0 0.0
        %v1613 = vand.u32 %v359, 4294901760
        %1614 = vmatpush1.msra.mxu0 %v1613
        %1615 = vmatprep.subr.mxu0 0.0
        %v1616 = vand.u32 %v360, 4294901760
        %1617 = vmatpush1.msra.mxu0 %v1616
        %1618 = vmatprep.subr.mxu0 0.0
        %v1619 = vand.u32 %v361, 4294901760
        %1620 = vmatpush1.msra.mxu0 %v1619
        %1621 = vmatprep.subr.mxu0 0.0
        %v1622 = vand.u32 %v362, 4294901760
        %1623 = vmatpush1.msra.mxu0 %v1622
        %1624 = vmatprep.subr.mxu0 0.0
        %v1625 = vand.u32 %v363, 4294901760
        %1626 = vmatpush1.msra.mxu0 %v1625
        %1627 = vmatprep.subr.mxu0 0.0
        %v1628 = vand.u32 %v364, 4294901760
        %1629 = vmatpush1.msra.mxu0 %v1628
        %1630 = vmatprep.subr.mxu0 0.0
        %v1631 = vand.u32 %v365, 4294901760
        %1632 = vmatpush1.msra.mxu0 %v1631
        %1633 = vmatprep.subr.mxu0 0.0
        %v1634 = vand.u32 %v366, 4294901760
        %1635 = vmatpush1.msra.mxu0 %v1634
        %1636 = vmatprep.subr.mxu0 0.0
        %v1637 = vand.u32 %v367, 4294901760
        %1638 = vmatpush1.msra.mxu0 %v1637
        %1639 = vmatprep.subr.mxu0 0.0
        %v1640 = vand.u32 %v368, 4294901760
        %1641 = vmatpush1.msra.mxu0 %v1640
        %1642 = vmatprep.subr.mxu0 0.0
        %v1643 = vand.u32 %v369, 4294901760
        %1644 = vmatpush1.msra.mxu0 %v1643
        %1645 = vmatprep.subr.mxu0 0.0
        %v1646 = vand.u32 %v370, 4294901760
        %1647 = vmatpush1.msra.mxu0 %v1646
        %1648 = vmatprep.subr.mxu0 0.0
        %v1649 = vand.u32 %v371, 4294901760
        %1650 = vmatpush1.msra.mxu0 %v1649
        %1651 = vmatprep.subr.mxu0 0.0
        %v1652 = vand.u32 %v372, 4294901760
        %1653 = vmatpush1.msra.mxu0 %v1652
        %1654 = vmatprep.subr.mxu0 0.0
        %1655 = vmatpush1.msra.mxu0 0.0
        %1656 = vmatprep.subr.mxu0 0.0
        %1657 = vmatpush1.msra.mxu0 0.0
        %1658 = vmatprep.subr.mxu0 0.0
        %1659 = vmatpush1.msra.mxu0 0.0
        %1660 = vmatprep.subr.mxu0 0.0
        %1661 = vmatpush1.msra.mxu0 0.0
        %1662 = vmatprep.subr.mxu0 0.0
        %1663 = vmatpush1.msra.mxu0 0.0
        %1664 = vmatprep.subr.mxu0 0.0
        %1665 = vmatpush1.msra.mxu0 0.0
        %1666 = vmatprep.subr.mxu0 0.0
        %1667 = vmatpush1.msra.mxu0 0.0
        %1668 = vmatprep.subr.mxu0 0.0
        %1669 = vmatpush1.msra.mxu0 0.0
        %1670 = vmatprep.subr.mxu0 0.0
        %1671 = vmatpush1.msra.mxu0 0.0
        %1672 = vmatprep.subr.mxu0 0.0
        %1673 = vmatpush1.msra.mxu0 0.0
        %1674 = vmatprep.subr.mxu0 0.0
        %1675 = vmatpush1.msra.mxu0 0.0
        %1676 = vmatprep.subr.mxu0 0.0
        %1677 = vmatpush1.msra.mxu0 0.0
        %1678 = vmatprep.subr.mxu0 0.0
        %1679 = vmatpush1.msra.mxu0 0.0
        %1680 = vmatprep.subr.mxu0 0.0
        %1681 = vmatpush1.msra.mxu0 0.0
        %1682 = vmatprep.subr.mxu0 0.0
        %1683 = vmatpush1.msra.mxu0 0.0
        %1684 = vmatprep.subr.mxu0 0.0
        %1685 = vmatpush1.msra.mxu0 0.0
        %1686 = vmatprep.mubr.f32.mxu0 0.0
        %v1687 = vand.u32 %v1050, 4294901760
        %1688 = vmatmul.mubr.f32.gmra.mrb[0].mxu0 %v1687
        %v1689 = vpop.f32.mrb[0].mxu0
        %v1690 = vadd.f32 %v1603, %v1689
        %v1691 = vpop.f32.mrb[0].mxu0
        %1692 = vdwg.mxu0
        %v1695 = vunpack.c.l.s4 1983009808
        %v1696 = vunpack.c.0.s8 %v1695
        %v1697 = vlaneseq
        %v1698 = vshrl.u32 %v1697, 7
        %v1699 = vsub.s32 %v1696, %v1698
        %v1700 = vrot.slane %v1690, %v1699
        %v1701 = vcombine.high %v1700, %v1700
        %1704 = vst [vmem:[%s352] sm:$0x3] %v1700
        %1705 = vst [vmem:[%s352 + $0x2] sm:$0x3] %v1701
        %s1706 = sand.u32 %s157, 1
        %s1707 = scalar_lea.sflag [#allocation4], %s1706
        %s1708 = sand.u32 %s157, 1
        %s1709 = smul.addr %s1708, 4
        %s1710 = scalar_lea.vmem [#allocation10], %s1709
        // Predicated region
        $region53: #{tpu_custom_call.1} parent=35 // pred_check
          %p1711 = pneg %p167
        $region54: #{tpu_custom_call.1} parent=35 // pred_check_branch
          %1713 = sbr.rel (%p1711) target = $region56
        $region55: #{tpu_custom_call.1} parent=35 // pred_region
          %s1715 = ssub.s32 64, 64
          %1716 = vsyncadd %s1707, %s1715
          %s1717 = smul.addr %s31, 2
          %s1718 = sadd.s32 %s32, %s1717
          %s1719 = smul.addr %s1718, 32
          %s1720 = scalar_lea.hbm %s4, %s1719
          %s1721 = sshll.u32 %s1710, 4
          %s1722 = int_to_ptr.vmem [resolvable:$true] %s1721
          %1727 = dma.vmem_to_hbm [thread:$0]  %s1722, 64, %s1720, %s1707, 32, 32, 2
        $region56: #{tpu_custom_call.1} parent=35 // pred_fallthru
          _
      $region36: #{tpu_custom_call.1} parent=5 // pred_fallthru
        _
      %p1728 = scmp.le.s32.totalorder 2, %s22
      // Predicated region
      $region57: #{tpu_custom_call.1} parent=5 // pred_check
        %p1729 = pneg %p1728
      $region58: #{tpu_custom_call.1} parent=5 // pred_check_branch
        %1731 = sbr.rel (%p1729) target = $region60
      $region59: #{tpu_custom_call.1} parent=5 // pred_region
        %s1732 = ssub.s32 %s22, 2
        // Predicated region
        $region61: #{tpu_custom_call.1} parent=59 // pred_check
          %p1733 = pneg %p173
        $region62: #{tpu_custom_call.1} parent=59 // pred_check_branch
          %1735 = sbr.rel (%p1733) target = $region64
        $region63: #{tpu_custom_call.1} parent=59 // pred_region
          %s1736 = sand.u32 %s158, 1
          %s1737 = scalar_lea.sflag [#allocation4], %s1736
          %s1738 = sand.u32 %s158, 1
          %s1739 = smul.addr %s1738, 4
          %s1740 = scalar_lea.vmem [#allocation10], %s1739
          %1741 = dma.done %s1737, 64
        $region64: #{tpu_custom_call.1} parent=59 // pred_fallthru
          _
      $region60: #{tpu_custom_call.1} parent=5 // pred_fallthru
        _
    $region6: #{tpu_custom_call.1} parent=1 // loop_footer
      %s26 = sadd.s32 1, %s22
    $region7: #{tpu_custom_call.1} parent=1 // loop_footer_branch
      %21 = sbr.rel target = $region3
    $region8: #{tpu_custom_call.1} parent=1 // loop_exit
      _
    %1742 = vsyncpa [#allocation3], 1
    %s1743 = scalar_lea.sflag [#allocation3], 1
    %1744 = vsyncpa %s1743, 1
    %1745 = vsyncpa [#allocation6], 1
    %s1746 = scalar_lea.sflag [#allocation6], 1
    %1747 = vsyncpa %s1746, 1
    %1748 = vsyncpa [#allocation9], 1
    %s1749 = scalar_lea.sflag [#allocation9], 1
    %1750 = vsyncpa %s1749, 1
    %1751 = vsyncpa [#allocation4], 1
    %s1752 = scalar_lea.sflag [#allocation4], 1
    %1753 = vsyncpa %s1752, 1

</llo_original>
